<compile_context>
chip_gen: v7x
topology: tpu7x:2x2x1
jax: 0.10.0
libtpu: 0.0.40
codegen_flags: <defaults>
</compile_context>

<pallas_src>
import functools
import math

import jax
import jax.numpy as jnp
from jax import lax
from jax.experimental import pallas as pl
from jax.experimental.pallas import tpu as pltpu


def _round_up(x, m):
    return ((x + m - 1) // m) * m


# --------------------------------- kernel ------------------------------------

def _fused_heads_kernel(num_classes, compute_dtype,
                        x_ref, m_ref, pok_ref, nok_ref, scale_ref,
                        w1_ref, b1_ref,
                        wc2_ref, bc2_ref, wr2_ref, br2_ref,
                        wc3_ref, wr3_ref, b3_ref,
                        out_ref):
    """Fused cls+reg 3-layer masked-conv1d heads over all (level, batch) rows.

    x_ref:    (N, Cin)             m/pok/nok/scale_ref: (N, 1)
    w1_ref:   (3*Cin, 2*Hd)        b1_ref: (1, 2*Hd)      (cls|reg layer-1 fused)
    wc2/wr2:  (3*Hd, Hd)           bc2/br2: (1, Hd)
    wc3/wr3:  (3*Hd, Cpad)         b3_ref: (1, Cpad)      (lane-padded to 128)
    out_ref:  (N, Cpad)  cols [0:num_classes] = cls logits, col num_classes = reg.
    """
    n = x_ref.shape[0]
    m = m_ref[...]
    pok = pok_ref[...]          # 1.0 if row-1 is in the same (level, batch) segment
    nok = nok_ref[...]          # 1.0 if row+1 is in the same segment

    def shift_cat(h):
        # Zero-padded +/-1 time shift via XLU roll (no MXU work); segment
        # boundaries (level/batch edges and the roll wrap-around) are zeroed.
        h_prev = pltpu.roll(h, 1, 0) * pok
        h_next = pltpu.roll(h, n - 1, 0) * nok
        # Fold the 3 conv taps into one K = 3*C matmul operand.
        return jnp.concatenate([h_prev, h, h_next], axis=-1)

    def mm(a, w_ref):
        return jnp.dot(a.astype(compute_dtype), w_ref[...].astype(compute_dtype),
                       preferred_element_type=jnp.float32)

    hd = wc2_ref.shape[1]

    # Layer 1: shared input -> both heads in one matmul (weights concat on Cout).
    h = jnp.maximum((mm(shift_cat(x_ref[...]), w1_ref) + b1_ref[...]) * m, 0.0)
    hc = h[:, :hd]              # cls hidden
    hr = h[:, hd:]              # reg hidden

    # Layer 2 (per head).
    hc = jnp.maximum((mm(shift_cat(hc), wc2_ref) + bc2_ref[...]) * m, 0.0)
    hr = jnp.maximum((mm(shift_cat(hr), wr2_ref) + br2_ref[...]) * m, 0.0)

    # Layer 3: both heads accumulate into one lane-dense 128-wide slab.
    y = (mm(shift_cat(hc), wc3_ref) + mm(shift_cat(hr), wr3_ref) + b3_ref[...]) * m
    col = lax.broadcasted_iota(jnp.int32, y.shape, 1)
    is_reg = col == num_classes
    # Reg column only: Scale() then F.relu (cls logits untouched).
    y = jnp.where(is_reg, jnp.maximum(y * scale_ref[...], 0.0), y)
    out_ref[...] = y


# --------------------------------- wrapper ------------------------------------

def fused_heads(fpn_feats, fpn_masks, params, *, compute_dtype=jnp.float32):
    """fpn_feats[l]: (B, T_l, Cin) f32, fpn_masks[l]: (B, T_l, 1) f32."""
    cls_p, reg_p = params["cls_head"], params["reg_head"]
    B, _, cin = fpn_feats[0].shape
    lens = [f.shape[1] for f in fpn_feats]
    hd = cls_p["w2"].shape[2]
    num_classes = cls_p["w3"].shape[2]
    cpad = _round_up(num_classes + 1, 128)       # lane-dense fused output width

    # ---- stack all (level, batch) time segments along the row (sublane) axis --
    xs, ms, scs, segs = [], [], [], []
    for lvl, (feat, mask) in enumerate(zip(fpn_feats, fpn_masks)):
        t = feat.shape[1]
        xs.append(feat.reshape(B * t, cin))
        ms.append(mask.reshape(B * t, 1).astype(jnp.float32))
        scs.append(jnp.broadcast_to(reg_p["scales"][lvl].reshape(1, 1), (B * t, 1)))
        segs.append(lvl * B + jnp.repeat(jnp.arange(B, dtype=jnp.int32), t))
    x_all = jnp.concatenate(xs, axis=0)
    m_all = jnp.concatenate(ms, axis=0)
    sc_all = jnp.concatenate(scs, axis=0).astype(jnp.float32)
    seg_all = jnp.concatenate(segs, axis=0)

    n = x_all.shape[0]
    n_pad = _round_up(max(n, 8), 8)
    pad = n_pad - n
    if pad:
        x_all = jnp.pad(x_all, ((0, pad), (0, 0)))
        m_all = jnp.pad(m_all, ((0, pad), (0, 0)))
        sc_all = jnp.pad(sc_all, ((0, pad), (0, 0)), constant_values=1.0)
        seg_all = jnp.pad(seg_all, ((0, pad),), constant_values=-1)

    # +/-1 shift validity masks (implement the conv's zero padding at every
    # level/batch segment boundary and at the roll wrap-around).
    same = (seg_all[1:] == seg_all[:-1]).astype(jnp.float32)
    pok = jnp.concatenate([jnp.zeros((1,), jnp.float32), same])[:, None]
    nok = jnp.concatenate([same, jnp.zeros((1,), jnp.float32)])[:, None]

    # ---- weight layout: (3, Cin, Cout) -> (3*Cin, Cout); fuse heads -----------
    w1 = jnp.concatenate([cls_p["w1"].reshape(3 * cin, hd),
                          reg_p["w1"].reshape(3 * cin, hd)], axis=1)
    b1 = jnp.concatenate([cls_p["b1"], reg_p["b1"]], axis=1)
    wc2 = cls_p["w2"].reshape(3 * hd, hd)
    wr2 = reg_p["w2"].reshape(3 * hd, hd)
    wc3 = jnp.zeros((3 * hd, cpad), jnp.float32).at[:, :num_classes].set(
        cls_p["w3"].reshape(3 * hd, num_classes))
    wr3 = jnp.zeros((3 * hd, cpad), jnp.float32).at[:, num_classes:num_classes + 1].set(
        reg_p["w3"].reshape(3 * hd, 1))
    b3 = (jnp.zeros((1, cpad), jnp.float32)
          .at[:, :num_classes].set(cls_p["b3"])
          .at[:, num_classes:num_classes + 1].set(reg_p["b3"]))

    kernel = functools.partial(_fused_heads_kernel, num_classes, compute_dtype)
    vmem_spec = lambda: pl.BlockSpec(memory_space=pltpu.MemorySpace.VMEM)
    # Single launch, whole problem resident in VMEM (tiny at these sizes).
    # TODO(synk): at production sizes (T~2304, C~512) tile the row axis into
    # halo'd blocks with a ("parallel",) grid + explicit vmem_limit_bytes for
    # v7x's 64 MiB VMEM / 2-TC megacore.
    slab = pl.pallas_call(
        kernel,
        out_shape=jax.ShapeDtypeStruct((n_pad, cpad), jnp.float32),
        in_specs=[vmem_spec() for _ in range(14)],
        out_specs=vmem_spec(),
    )(x_all, m_all, pok, nok, sc_all,
      w1, b1, wc2, cls_p["b2"], wr2, reg_p["b2"], wc3, wr3, b3)

    # Unstack the lane-dense slab back into per-level outputs (layout plumbing).
    cls_all = slab[:n, :num_classes]
    off_all = slab[:n, num_classes:num_classes + 1]
    out_cls, out_off = [], []
    row = 0
    for t in lens:
        k = B * t
        out_cls.append(cls_all[row:row + k].reshape(B, t, num_classes))
        out_off.append(off_all[row:row + k].reshape(B, t, 1))
        row += k
    return out_cls, out_off


# ----------------------- deterministic parameter init -----------------------

def _conv_params(key, cin, cout, k=3, bias_fill=None):
    """PyTorch-Conv1d-style uniform init, laid out as (k, Cin, Cout)."""
    kw, kb = jax.random.split(key)
    bound = 1.0 / math.sqrt(cin * k)
    w = jax.random.uniform(kw, (k, cin, cout), jnp.float32, -bound, bound)
    if bias_fill is None:
        b = jax.random.uniform(kb, (1, cout), jnp.float32, -bound, bound)
    else:
        b = jnp.full((1, cout), bias_fill, jnp.float32)
    return w, b


def init_params(key, fpn_dim, head_dim, num_classes, fpn_levels,
                prior_prob=0.01, kernel_size=3):
    keys = jax.random.split(key, 6)
    cls_bias = -math.log((1.0 - prior_prob) / prior_prob)
    cw1, cb1 = _conv_params(keys[0], fpn_dim, head_dim, kernel_size)
    cw2, cb2 = _conv_params(keys[1], head_dim, head_dim, kernel_size)
    cw3, cb3 = _conv_params(keys[2], head_dim, num_classes, kernel_size,
                            bias_fill=cls_bias)
    rw1, rb1 = _conv_params(keys[3], fpn_dim, head_dim, kernel_size)
    rw2, rb2 = _conv_params(keys[4], head_dim, head_dim, kernel_size)
    rw3, rb3 = _conv_params(keys[5], head_dim, 1, kernel_size)
    return {
        "cls_head": dict(w1=cw1, b1=cb1, w2=cw2, b2=cb2, w3=cw3, b3=cb3),
        "reg_head": dict(w1=rw1, b1=rb1, w2=rw2, b2=rb2, w3=rw3, b3=rb3,
                         scales=jnp.ones((fpn_levels, 1, 1), jnp.float32)),
    }


# ----------------------------- model forward --------------------------------

def pt_transformer_forward(fpn_feats, fpn_masks, params, *,
                           compute_dtype=jnp.float32):
    """Head portion of PtTransformer.forward (post permute/squeeze layout)."""
    # TODO(synk): backbone (conv/convTransformer), FPN neck, point generator,
    # label assignment + focal/KLD losses and NMS-based inference depend on
    # external factories and host-side data-dependent logic; not implemented.
    out_cls, out_off = fused_heads(fpn_feats, fpn_masks, params,
                                   compute_dtype=compute_dtype)
    fpn_masks_sq = [m[..., 0] for m in fpn_masks]
    return tuple(out_cls), tuple(out_off), fpn_masks_sq


# -------------------------- pure-JAX reference ------------------------------

def _ref_masked_conv(x, m, w, b):
    T = x.shape[1]
    xp = jnp.pad(x, ((0, 0), (1, 1), (0, 0)))
    y = sum(jnp.einsum("btc,cd->btd", xp[:, k:k + T, :], w[k]) for k in range(3))
    return (y + b[None]) * m


def _ref_head(feat, mask, p, scale, final_relu):
    h = jax.nn.relu(_ref_masked_conv(feat, mask, p["w1"], p["b1"]))
    h = jax.nn.relu(_ref_masked_conv(h, mask, p["w2"], p["b2"]))
    y = _ref_masked_conv(h, mask, p["w3"], p["b3"]) * scale
    return jax.nn.relu(y) if final_relu else y


# --------------------------------- main --------------------------------------

if __name__ == "__main__":
    key = jax.random.PRNGKey(0)
    B, fpn_dim, head_dim, num_classes = 2, 32, 32, 8
    level_lens = [16, 8, 4]                     # FPN pyramid (scale_factor=2)

    key, pkey = jax.random.split(key)
    params = init_params(pkey, fpn_dim, head_dim, num_classes,
                         fpn_levels=len(level_lens))

    fpn_feats, fpn_masks = [], []
    for T in level_lens:
        key, fkey = jax.random.split(key)
        valid = jnp.array([T, max(T // 2, 1)], jnp.int32)        # per-video lens
        m = (jnp.arange(T)[None, :] < valid[:, None]).astype(jnp.float32)[..., None]
        x = jax.random.normal(fkey, (B, T, fpn_dim), jnp.float32) * m  # zero-padded
        fpn_feats.append(x)
        fpn_masks.append(m)

    # f32 path (exact semantics).
    out_cls, out_off, masks_sq = pt_transformer_forward(fpn_feats, fpn_masks, params)
    jax.block_until_ready((out_cls, out_off, masks_sq))

    for lvl in range(len(level_lens)):
        ref_c = _ref_head(fpn_feats[lvl], fpn_masks[lvl], params["cls_head"],
                          1.0, final_relu=False)
        ref_o = _ref_head(fpn_feats[lvl], fpn_masks[lvl], params["reg_head"],
                          params["reg_head"]["scales"][lvl], final_relu=True)
        assert jnp.allclose(out_cls[lvl], ref_c, atol=2e-3, rtol=2e-3), lvl
        assert jnp.allclose(out_off[lvl], ref_o, atol=2e-3, rtol=2e-3), lvl

    # bf16 MXU path (v6e/v7x perf option) — verify with loose tolerance.
    out_cls_bf, out_off_bf, _ = pt_transformer_forward(
        fpn_feats, fpn_masks, params, compute_dtype=jnp.bfloat16)
    jax.block_until_ready((out_cls_bf, out_off_bf))
    for lvl in range(len(level_lens)):
        assert jnp.allclose(out_cls_bf[lvl], out_cls[lvl], atol=1e-1, rtol=1e-1), lvl
        assert jnp.allclose(out_off_bf[lvl], out_off[lvl], atol=1e-1, rtol=1e-1), lvl

    print("KERNEL_OK")
</pallas_src>

<mosaic_0001>
module attributes {stable_mosaic.version = 11 : i64} {
  func.func @_fused_heads_kernel(%arg0: memref<56x32xf32, #tpu.memory_space<vmem>>, %arg1: memref<56x1xf32, #tpu.memory_space<vmem>>, %arg2: memref<56x1xf32, #tpu.memory_space<vmem>>, %arg3: memref<56x1xf32, #tpu.memory_space<vmem>>, %arg4: memref<56x1xf32, #tpu.memory_space<vmem>>, %arg5: memref<96x64xf32, #tpu.memory_space<vmem>>, %arg6: memref<1x64xf32, #tpu.memory_space<vmem>>, %arg7: memref<96x32xf32, #tpu.memory_space<vmem>>, %arg8: memref<1x32xf32, #tpu.memory_space<vmem>>, %arg9: memref<96x32xf32, #tpu.memory_space<vmem>>, %arg10: memref<1x32xf32, #tpu.memory_space<vmem>>, %arg11: memref<96x128xf32, #tpu.memory_space<vmem>>, %arg12: memref<96x128xf32, #tpu.memory_space<vmem>>, %arg13: memref<1x128xf32, #tpu.memory_space<vmem>>, %arg14: memref<56x128xf32, #tpu.memory_space<vmem>>) attributes {dimension_semantics = [], scalar_prefetch = 0 : i64, scratch_operands = 0 : i64, tpu.core_type = #tpu.core_type<tc>} {
    %c0 = arith.constant 0 : index
    %c0_0 = arith.constant 0 : index
    %0 = vector.load %arg1[%c0, %c0_0] : memref<56x1xf32, #tpu.memory_space<vmem>>, vector<56x1xf32>
    %c0_1 = arith.constant 0 : index
    %c0_2 = arith.constant 0 : index
    %1 = vector.load %arg2[%c0_1, %c0_2] : memref<56x1xf32, #tpu.memory_space<vmem>>, vector<56x1xf32>
    %c0_3 = arith.constant 0 : index
    %c0_4 = arith.constant 0 : index
    %2 = vector.load %arg3[%c0_3, %c0_4] : memref<56x1xf32, #tpu.memory_space<vmem>>, vector<56x1xf32>
    %c0_5 = arith.constant 0 : index
    %c0_6 = arith.constant 0 : index
    %3 = vector.load %arg0[%c0_5, %c0_6] : memref<56x32xf32, #tpu.memory_space<vmem>>, vector<56x32xf32>
    %c1_i32 = arith.constant 1 : i32
    %4 = tpu.dynamic_rotate %3 by %c1_i32 dim 0 : vector<56x32xf32>, i32 -> vector<56x32xf32>
    %5 = vector.broadcast %1 : vector<56x1xf32> to vector<56x32xf32>
    %6 = arith.mulf %4, %5 : vector<56x32xf32>
    %c55_i32 = arith.constant 55 : i32
    %7 = tpu.dynamic_rotate %3 by %c55_i32 dim 0 : vector<56x32xf32>, i32 -> vector<56x32xf32>
    %8 = vector.broadcast %2 : vector<56x1xf32> to vector<56x32xf32>
    %9 = arith.mulf %7, %8 : vector<56x32xf32>
    %10 = tpu.concatenate %6, %3, %9 in 1 : vector<56x32xf32>, vector<56x32xf32>, vector<56x32xf32> -> vector<56x96xf32>
    %c0_7 = arith.constant 0 : index
    %c0_8 = arith.constant 0 : index
    %11 = vector.load %arg5[%c0_7, %c0_8] : memref<96x64xf32, #tpu.memory_space<vmem>>, vector<96x64xf32>
    %cst = arith.constant dense<0.000000e+00> : vector<56x64xf32>
    %12 = tpu.matmul %10, %11, %cst {dimension_numbers = #tpu.dot_dimension_numbers<[1], [0], [0], [1], [0, 0, 1, 1], [], []>} : vector<56x96xf32>, vector<96x64xf32>, vector<56x64xf32> -> vector<56x64xf32>
    %c0_9 = arith.constant 0 : index
    %c0_10 = arith.constant 0 : index
    %13 = vector.load %arg6[%c0_9, %c0_10] : memref<1x64xf32, #tpu.memory_space<vmem>>, vector<1x64xf32>
    %14 = vector.broadcast %13 : vector<1x64xf32> to vector<56x64xf32>
    %15 = arith.addf %12, %14 : vector<56x64xf32>
    %16 = vector.broadcast %0 : vector<56x1xf32> to vector<56x64xf32>
    %17 = arith.mulf %15, %16 : vector<56x64xf32>
    %cst_11 = arith.constant 0.000000e+00 : f32
    %18 = vector.broadcast %cst_11 : f32 to vector<56x64xf32>
    %19 = arith.maximumf %17, %18 : vector<56x64xf32>
    %20 = vector.extract_strided_slice %19 {offsets = [0, 0], sizes = [56, 32], strides = [1, 1]} : vector<56x64xf32> to vector<56x32xf32>
    %21 = vector.extract_strided_slice %19 {offsets = [0, 32], sizes = [56, 32], strides = [1, 1]} : vector<56x64xf32> to vector<56x32xf32>
    %c1_i32_12 = arith.constant 1 : i32
    %22 = tpu.dynamic_rotate %20 by %c1_i32_12 dim 0 : vector<56x32xf32>, i32 -> vector<56x32xf32>
    %23 = vector.broadcast %1 : vector<56x1xf32> to vector<56x32xf32>
    %24 = arith.mulf %22, %23 : vector<56x32xf32>
    %c55_i32_13 = arith.constant 55 : i32
    %25 = tpu.dynamic_rotate %20 by %c55_i32_13 dim 0 : vector<56x32xf32>, i32 -> vector<56x32xf32>
    %26 = vector.broadcast %2 : vector<56x1xf32> to vector<56x32xf32>
    %27 = arith.mulf %25, %26 : vector<56x32xf32>
    %28 = tpu.concatenate %24, %20, %27 in 1 : vector<56x32xf32>, vector<56x32xf32>, vector<56x32xf32> -> vector<56x96xf32>
    %c0_14 = arith.constant 0 : index
    %c0_15 = arith.constant 0 : index
    %29 = vector.load %arg7[%c0_14, %c0_15] : memref<96x32xf32, #tpu.memory_space<vmem>>, vector<96x32xf32>
    %cst_16 = arith.constant dense<0.000000e+00> : vector<56x32xf32>
    %30 = tpu.matmul %28, %29, %cst_16 {dimension_numbers = #tpu.dot_dimension_numbers<[1], [0], [0], [1], [0, 0, 1, 1], [], []>} : vector<56x96xf32>, vector<96x32xf32>, vector<56x32xf32> -> vector<56x32xf32>
    %c0_17 = arith.constant 0 : index
    %c0_18 = arith.constant 0 : index
    %31 = vector.load %arg8[%c0_17, %c0_18] : memref<1x32xf32, #tpu.memory_space<vmem>>, vector<1x32xf32>
    %32 = vector.broadcast %31 : vector<1x32xf32> to vector<56x32xf32>
    %33 = arith.addf %30, %32 : vector<56x32xf32>
    %34 = vector.broadcast %0 : vector<56x1xf32> to vector<56x32xf32>
    %35 = arith.mulf %33, %34 : vector<56x32xf32>
    %cst_19 = arith.constant 0.000000e+00 : f32
    %36 = vector.broadcast %cst_19 : f32 to vector<56x32xf32>
    %37 = arith.maximumf %35, %36 : vector<56x32xf32>
    %c1_i32_20 = arith.constant 1 : i32
    %38 = tpu.dynamic_rotate %21 by %c1_i32_20 dim 0 : vector<56x32xf32>, i32 -> vector<56x32xf32>
    %39 = vector.broadcast %1 : vector<56x1xf32> to vector<56x32xf32>
    %40 = arith.mulf %38, %39 : vector<56x32xf32>
    %c55_i32_21 = arith.constant 55 : i32
    %41 = tpu.dynamic_rotate %21 by %c55_i32_21 dim 0 : vector<56x32xf32>, i32 -> vector<56x32xf32>
    %42 = vector.broadcast %2 : vector<56x1xf32> to vector<56x32xf32>
    %43 = arith.mulf %41, %42 : vector<56x32xf32>
    %44 = tpu.concatenate %40, %21, %43 in 1 : vector<56x32xf32>, vector<56x32xf32>, vector<56x32xf32> -> vector<56x96xf32>
    %c0_22 = arith.constant 0 : index
    %c0_23 = arith.constant 0 : index
    %45 = vector.load %arg9[%c0_22, %c0_23] : memref<96x32xf32, #tpu.memory_space<vmem>>, vector<96x32xf32>
    %cst_24 = arith.constant dense<0.000000e+00> : vector<56x32xf32>
    %46 = tpu.matmul %44, %45, %cst_24 {dimension_numbers = #tpu.dot_dimension_numbers<[1], [0], [0], [1], [0, 0, 1, 1], [], []>} : vector<56x96xf32>, vector<96x32xf32>, vector<56x32xf32> -> vector<56x32xf32>
    %c0_25 = arith.constant 0 : index
    %c0_26 = arith.constant 0 : index
    %47 = vector.load %arg10[%c0_25, %c0_26] : memref<1x32xf32, #tpu.memory_space<vmem>>, vector<1x32xf32>
    %48 = vector.broadcast %47 : vector<1x32xf32> to vector<56x32xf32>
    %49 = arith.addf %46, %48 : vector<56x32xf32>
    %50 = vector.broadcast %0 : vector<56x1xf32> to vector<56x32xf32>
    %51 = arith.mulf %49, %50 : vector<56x32xf32>
    %cst_27 = arith.constant 0.000000e+00 : f32
    %52 = vector.broadcast %cst_27 : f32 to vector<56x32xf32>
    %53 = arith.maximumf %51, %52 : vector<56x32xf32>
    %c1_i32_28 = arith.constant 1 : i32
    %54 = tpu.dynamic_rotate %37 by %c1_i32_28 dim 0 : vector<56x32xf32>, i32 -> vector<56x32xf32>
    %55 = vector.broadcast %1 : vector<56x1xf32> to vector<56x32xf32>
    %56 = arith.mulf %54, %55 : vector<56x32xf32>
    %c55_i32_29 = arith.constant 55 : i32
    %57 = tpu.dynamic_rotate %37 by %c55_i32_29 dim 0 : vector<56x32xf32>, i32 -> vector<56x32xf32>
    %58 = vector.broadcast %2 : vector<56x1xf32> to vector<56x32xf32>
    %59 = arith.mulf %57, %58 : vector<56x32xf32>
    %60 = tpu.concatenate %56, %37, %59 in 1 : vector<56x32xf32>, vector<56x32xf32>, vector<56x32xf32> -> vector<56x96xf32>
    %c0_30 = arith.constant 0 : index
    %c0_31 = arith.constant 0 : index
    %61 = vector.load %arg11[%c0_30, %c0_31] : memref<96x128xf32, #tpu.memory_space<vmem>>, vector<96x128xf32>
    %cst_32 = arith.constant dense<0.000000e+00> : vector<56x128xf32>
    %62 = tpu.matmul %60, %61, %cst_32 {dimension_numbers = #tpu.dot_dimension_numbers<[1], [0], [0], [1], [0, 0, 1, 1], [], []>} : vector<56x96xf32>, vector<96x128xf32>, vector<56x128xf32> -> vector<56x128xf32>
    %c1_i32_33 = arith.constant 1 : i32
    %63 = tpu.dynamic_rotate %53 by %c1_i32_33 dim 0 : vector<56x32xf32>, i32 -> vector<56x32xf32>
    %64 = vector.broadcast %1 : vector<56x1xf32> to vector<56x32xf32>
    %65 = arith.mulf %63, %64 : vector<56x32xf32>
    %c55_i32_34 = arith.constant 55 : i32
    %66 = tpu.dynamic_rotate %53 by %c55_i32_34 dim 0 : vector<56x32xf32>, i32 -> vector<56x32xf32>
    %67 = vector.broadcast %2 : vector<56x1xf32> to vector<56x32xf32>
    %68 = arith.mulf %66, %67 : vector<56x32xf32>
    %69 = tpu.concatenate %65, %53, %68 in 1 : vector<56x32xf32>, vector<56x32xf32>, vector<56x32xf32> -> vector<56x96xf32>
    %c0_35 = arith.constant 0 : index
    %c0_36 = arith.constant 0 : index
    %70 = vector.load %arg12[%c0_35, %c0_36] : memref<96x128xf32, #tpu.memory_space<vmem>>, vector<96x128xf32>
    %cst_37 = arith.constant dense<0.000000e+00> : vector<56x128xf32>
    %71 = tpu.matmul %69, %70, %cst_37 {dimension_numbers = #tpu.dot_dimension_numbers<[1], [0], [0], [1], [0, 0, 1, 1], [], []>} : vector<56x96xf32>, vector<96x128xf32>, vector<56x128xf32> -> vector<56x128xf32>
    %72 = arith.addf %62, %71 : vector<56x128xf32>
    %c0_38 = arith.constant 0 : index
    %c0_39 = arith.constant 0 : index
    %73 = vector.load %arg13[%c0_38, %c0_39] : memref<1x128xf32, #tpu.memory_space<vmem>>, vector<1x128xf32>
    %74 = vector.broadcast %73 : vector<1x128xf32> to vector<56x128xf32>
    %75 = arith.addf %72, %74 : vector<56x128xf32>
    %76 = vector.broadcast %0 : vector<56x1xf32> to vector<56x128xf32>
    %77 = arith.mulf %75, %76 : vector<56x128xf32>
    %78 = tpu.iota {dimensions = array<i32: 1>} : vector<56x128xi32>
    %c8_i32 = arith.constant 8 : i32
    %79 = vector.broadcast %c8_i32 : i32 to vector<56x128xi32>
    %80 = arith.cmpi eq, %78, %79 : vector<56x128xi32>
    %c0_40 = arith.constant 0 : index
    %c0_41 = arith.constant 0 : index
    %81 = vector.load %arg4[%c0_40, %c0_41] : memref<56x1xf32, #tpu.memory_space<vmem>>, vector<56x1xf32>
    %82 = vector.broadcast %81 : vector<56x1xf32> to vector<56x128xf32>
    %83 = arith.mulf %77, %82 : vector<56x128xf32>
    %cst_42 = arith.constant 0.000000e+00 : f32
    %84 = vector.broadcast %cst_42 : f32 to vector<56x128xf32>
    %85 = arith.maximumf %83, %84 : vector<56x128xf32>
    %86 = arith.select %80, %85, %77 : vector<56x128xi1>, vector<56x128xf32>
    %c0_43 = arith.constant 0 : index
    %c0_44 = arith.constant 0 : index
    %87 = vector.load %arg14[%c0_43, %c0_44] : memref<56x128xf32, #tpu.memory_space<vmem>>, vector<56x128xf32>
    tpu.vector_store %arg14[%c0_43, %c0_44], %86 {strides = array<i32>} : memref<56x128xf32, #tpu.memory_space<vmem>>, vector<56x128xf32>,
    return
  }
}

</mosaic_0001>

<llo_original>
// kernel: tpu_custom_call.1
$region0: #{tpu_custom_call.1}
  #allocation0 [shape = 'u32[]', space=smem, size = 0x4, offset = 0x4, fixed_abs, tag = 'smem constant byte address 0x4 - core index']
  #allocation1 [shape = 'u32[144,128]{1,0:T(1,128)}', space=vmem, size = 0x12000, scoped, tag = 'internal scratch']
  %s0 = inlined_call_operand.vmem [shape: f32[56,32], index: 0, kind: input, shape index: {}]
  %s1 = inlined_call_operand.vmem [shape: f32[56,1], index: 1, kind: input, shape index: {}]
  %s2 = inlined_call_operand.vmem [shape: f32[56,1], index: 2, kind: input, shape index: {}]
  %s3 = inlined_call_operand.vmem [shape: f32[56,1], index: 3, kind: input, shape index: {}]
  %s4 = inlined_call_operand.vmem [shape: f32[56,1], index: 4, kind: input, shape index: {}]
  %s5 = inlined_call_operand.vmem [shape: f32[96,64], index: 5, kind: input, shape index: {}]
  %s6 = inlined_call_operand.vmem [shape: f32[1,64], index: 6, kind: input, shape index: {}]
  %s7 = inlined_call_operand.vmem [shape: f32[96,32], index: 7, kind: input, shape index: {}]
  %s8 = inlined_call_operand.vmem [shape: f32[1,32], index: 8, kind: input, shape index: {}]
  %s9 = inlined_call_operand.vmem [shape: f32[96,32], index: 9, kind: input, shape index: {}]
  %s10 = inlined_call_operand.vmem [shape: f32[1,32], index: 10, kind: input, shape index: {}]
  %s11 = inlined_call_operand.vmem [shape: f32[96,128], index: 11, kind: input, shape index: {}]
  %s12 = inlined_call_operand.vmem [shape: f32[96,128], index: 12, kind: input, shape index: {}]
  %s13 = inlined_call_operand.vmem [shape: f32[1,128], index: 13, kind: input, shape index: {}]
  %s14 = inlined_call_operand.hbm [shape: f32[56,128], index: 14, kind: output, shape index: {}]
  %s15 = sld [smem:[#allocation0]]
  $region66: #{tpu_custom_call.1} parent=0
    _
  %s17 = ssub.s32 1, %s15
  %s18 = scalar_select 0, %s17, %s15
  $region1: #{tpu_custom_call.1} parent=0
    #allocation2 [shape = 'u8[28672]{0}', space=vmem, size = 0x7000, scoped, tag = 'output window, operand 0, single buffered']
    #allocation3 [shape = 's32[1]{0}', space=sflag, size = 0x4, scoped, tag = 'scoped memory for tpu_custom_call.1']
    %19 = vsyncpa [#allocation3], 0
    // Predicated region
    $region2: #{tpu_custom_call.1} parent=1 // pred_check
      _
    $region3: #{tpu_custom_call.1} parent=1 // pred_check_branch
      %21 = sbr.rel (0) target = $region5
    $region4: #{tpu_custom_call.1} parent=1 // pred_region
      _
    $region5: #{tpu_custom_call.1} parent=1 // pred_fallthru
      _
    // Predicated region
    $region6: #{tpu_custom_call.1} parent=1 // pred_check
      _
    $region7: #{tpu_custom_call.1} parent=1 // pred_check_branch
      %23 = sbr.rel (0) target = $region9
    $region8: #{tpu_custom_call.1} parent=1 // pred_region
      _
    $region9: #{tpu_custom_call.1} parent=1 // pred_fallthru
      _
    // Predicated region
    $region10: #{tpu_custom_call.1} parent=1 // pred_check
      _
    $region11: #{tpu_custom_call.1} parent=1 // pred_check_branch
      %25 = sbr.rel (0) target = $region13
    $region12: #{tpu_custom_call.1} parent=1 // pred_region
      _
    $region13: #{tpu_custom_call.1} parent=1 // pred_fallthru
      _
    // Predicated region
    $region14: #{tpu_custom_call.1} parent=1 // pred_check
      _
    $region15: #{tpu_custom_call.1} parent=1 // pred_check_branch
      %27 = sbr.rel (0) target = $region17
    $region16: #{tpu_custom_call.1} parent=1 // pred_region
      _
    $region17: #{tpu_custom_call.1} parent=1 // pred_fallthru
      _
    // Predicated region
    $region18: #{tpu_custom_call.1} parent=1 // pred_check
      _
    $region19: #{tpu_custom_call.1} parent=1 // pred_check_branch
      %29 = sbr.rel (0) target = $region21
    $region20: #{tpu_custom_call.1} parent=1 // pred_region
      _
    $region21: #{tpu_custom_call.1} parent=1 // pred_fallthru
      _
    // Predicated region
    $region22: #{tpu_custom_call.1} parent=1 // pred_check
      _
    $region23: #{tpu_custom_call.1} parent=1 // pred_check_branch
      %31 = sbr.rel (0) target = $region25
    $region24: #{tpu_custom_call.1} parent=1 // pred_region
      _
    $region25: #{tpu_custom_call.1} parent=1 // pred_fallthru
      _
    // Predicated region
    $region26: #{tpu_custom_call.1} parent=1 // pred_check
      _
    $region27: #{tpu_custom_call.1} parent=1 // pred_check_branch
      %33 = sbr.rel (0) target = $region29
    $region28: #{tpu_custom_call.1} parent=1 // pred_region
      _
    $region29: #{tpu_custom_call.1} parent=1 // pred_fallthru
      _
    // Predicated region
    $region30: #{tpu_custom_call.1} parent=1 // pred_check
      _
    $region31: #{tpu_custom_call.1} parent=1 // pred_check_branch
      %35 = sbr.rel (0) target = $region33
    $region32: #{tpu_custom_call.1} parent=1 // pred_region
      _
    $region33: #{tpu_custom_call.1} parent=1 // pred_fallthru
      _
    // Predicated region
    $region34: #{tpu_custom_call.1} parent=1 // pred_check
      _
    $region35: #{tpu_custom_call.1} parent=1 // pred_check_branch
      %37 = sbr.rel (0) target = $region37
    $region36: #{tpu_custom_call.1} parent=1 // pred_region
      _
    $region37: #{tpu_custom_call.1} parent=1 // pred_fallthru
      _
    // Predicated region
    $region38: #{tpu_custom_call.1} parent=1 // pred_check
      _
    $region39: #{tpu_custom_call.1} parent=1 // pred_check_branch
      %39 = sbr.rel (0) target = $region41
    $region40: #{tpu_custom_call.1} parent=1 // pred_region
      _
    $region41: #{tpu_custom_call.1} parent=1 // pred_fallthru
      _
    // Predicated region
    $region42: #{tpu_custom_call.1} parent=1 // pred_check
      _
    $region43: #{tpu_custom_call.1} parent=1 // pred_check_branch
      %41 = sbr.rel (0) target = $region45
    $region44: #{tpu_custom_call.1} parent=1 // pred_region
      _
    $region45: #{tpu_custom_call.1} parent=1 // pred_fallthru
      _
    // Predicated region
    $region46: #{tpu_custom_call.1} parent=1 // pred_check
      _
    $region47: #{tpu_custom_call.1} parent=1 // pred_check_branch
      %43 = sbr.rel (0) target = $region49
    $region48: #{tpu_custom_call.1} parent=1 // pred_region
      _
    $region49: #{tpu_custom_call.1} parent=1 // pred_fallthru
      _
    // Predicated region
    $region50: #{tpu_custom_call.1} parent=1 // pred_check
      _
    $region51: #{tpu_custom_call.1} parent=1 // pred_check_branch
      %45 = sbr.rel (0) target = $region53
    $region52: #{tpu_custom_call.1} parent=1 // pred_region
      _
    $region53: #{tpu_custom_call.1} parent=1 // pred_fallthru
      _
    // Predicated region
    $region54: #{tpu_custom_call.1} parent=1 // pred_check
      _
    $region55: #{tpu_custom_call.1} parent=1 // pred_check_branch
      %47 = sbr.rel (0) target = $region57
    $region56: #{tpu_custom_call.1} parent=1 // pred_region
      _
    $region57: #{tpu_custom_call.1} parent=1 // pred_fallthru
      _
    %v48 = vld [vmem:[%s1] sm:$0xff]
    %v49 = vld [vmem:[%s1 + $0x8] sm:$0xff]
    %v50 = vld [vmem:[%s1 + $0x10] sm:$0xff]
    %v51 = vld [vmem:[%s1 + $0x18] sm:$0xff]
    %v52 = vld [vmem:[%s1 + $0x20] sm:$0xff]
    %v53 = vld [vmem:[%s1 + $0x28] sm:$0xff]
    %v54 = vld [vmem:[%s1 + $0x30] sm:$0xff]
    %v55 = vld [vmem:[%s2] sm:$0xff]
    %v56 = vld [vmem:[%s2 + $0x8] sm:$0xff]
    %v57 = vld [vmem:[%s2 + $0x10] sm:$0xff]
    %v58 = vld [vmem:[%s2 + $0x18] sm:$0xff]
    %v59 = vld [vmem:[%s2 + $0x20] sm:$0xff]
    %v60 = vld [vmem:[%s2 + $0x28] sm:$0xff]
    %v61 = vld [vmem:[%s2 + $0x30] sm:$0xff]
    %v62 = vld [vmem:[%s3] sm:$0xff]
    %v63 = vld [vmem:[%s3 + $0x8] sm:$0xff]
    %v64 = vld [vmem:[%s3 + $0x10] sm:$0xff]
    %v65 = vld [vmem:[%s3 + $0x18] sm:$0xff]
    %v66 = vld [vmem:[%s3 + $0x20] sm:$0xff]
    %v67 = vld [vmem:[%s3 + $0x28] sm:$0xff]
    %v68 = vld [vmem:[%s3 + $0x30] sm:$0xff]
    %v69 = vld [vmem:[%s0] sm:$0xff]
    %v70 = vld [vmem:[%s0 + $0x8] sm:$0xff]
    %v71 = vld [vmem:[%s0 + $0x10] sm:$0xff]
    %v72 = vld [vmem:[%s0 + $0x18] sm:$0xff]
    %v73 = vld [vmem:[%s0 + $0x20] sm:$0xff]
    %v74 = vld [vmem:[%s0 + $0x28] sm:$0xff]
    %v75 = vld [vmem:[%s0 + $0x30] sm:$0xff]
    %v76 = vrot.slane %v69, 7
    %v77 = vrot.slane %v70, 7
    %v78 = vrot.slane %v71, 7
    %v79 = vrot.slane %v72, 7
    %v80 = vrot.slane %v73, 7
    %v81 = vrot.slane %v74, 7
    %v82 = vrot.slane %v75, 7
    %v83 = vlaneseq
    %v84 = vshrl.u32 %v83, 7
    %vm85 = vcmp.lt.s32.totalorder %v84, 1
    %v86 = vsel %vm85, %v81, %v82
    %v87 = vsel %vm85, %v80, %v81
    %v88 = vsel %vm85, %v79, %v80
    %v89 = vsel %vm85, %v78, %v79
    %v90 = vsel %vm85, %v77, %v78
    %v91 = vsel %vm85, %v76, %v77
    %v92 = vsel %vm85, %v82, %v76
    %94 = vset.pattern.permute.xlu0 0
    %95 = vperm.xlu0 %94, %v55
    %v96 = vpop.permute.xlu0 %95
    %99 = vset.pattern.permute.xlu0 0
    %100 = vperm.xlu0 %99, %v56
    %v101 = vpop.permute.xlu0 %100
    %104 = vset.pattern.permute.xlu0 0
    %105 = vperm.xlu0 %104, %v57
    %v106 = vpop.permute.xlu0 %105
    %109 = vset.pattern.permute.xlu0 0
    %110 = vperm.xlu0 %109, %v58
    %v111 = vpop.permute.xlu0 %110
    %114 = vset.pattern.permute.xlu0 0
    %115 = vperm.xlu0 %114, %v59
    %v116 = vpop.permute.xlu0 %115
    %119 = vset.pattern.permute.xlu0 0
    %120 = vperm.xlu0 %119, %v60
    %v121 = vpop.permute.xlu0 %120
    %124 = vset.pattern.permute.xlu0 0
    %125 = vperm.xlu0 %124, %v61
    %v126 = vpop.permute.xlu0 %125
    %v128 = vmul.f32 %v92, %v96
    %v129 = vmul.f32 %v91, %v101
    %v130 = vmul.f32 %v90, %v106
    %v131 = vmul.f32 %v89, %v111
    %v132 = vmul.f32 %v88, %v116
    %v133 = vmul.f32 %v87, %v121
    %v134 = vmul.f32 %v86, %v126
    %v135 = vrot.slane %v69, 1
    %v136 = vrot.slane %v70, 1
    %v137 = vrot.slane %v71, 1
    %v138 = vrot.slane %v72, 1
    %v139 = vrot.slane %v73, 1
    %v140 = vrot.slane %v74, 1
    %v141 = vrot.slane %v75, 1
    %vm142 = vcmp.lt.s32.totalorder %v84, 7
    %v143 = vsel %vm142, %v140, %v141
    %v144 = vsel %vm142, %v139, %v140
    %v145 = vsel %vm142, %v138, %v139
    %v146 = vsel %vm142, %v137, %v138
    %v147 = vsel %vm142, %v136, %v137
    %v148 = vsel %vm142, %v135, %v136
    %v149 = vsel %vm142, %v141, %v135
    %151 = vset.pattern.permute.xlu0 0
    %152 = vperm.xlu0 %151, %v62
    %v153 = vpop.permute.xlu0 %152
    %156 = vset.pattern.permute.xlu0 0
    %157 = vperm.xlu0 %156, %v63
    %v158 = vpop.permute.xlu0 %157
    %161 = vset.pattern.permute.xlu0 0
    %162 = vperm.xlu0 %161, %v64
    %v163 = vpop.permute.xlu0 %162
    %166 = vset.pattern.permute.xlu0 0
    %167 = vperm.xlu0 %166, %v65
    %v168 = vpop.permute.xlu0 %167
    %171 = vset.pattern.permute.xlu0 0
    %172 = vperm.xlu0 %171, %v66
    %v173 = vpop.permute.xlu0 %172
    %176 = vset.pattern.permute.xlu0 0
    %177 = vperm.xlu0 %176, %v67
    %v178 = vpop.permute.xlu0 %177
    %181 = vset.pattern.permute.xlu0 0
    %182 = vperm.xlu0 %181, %v68
    %v183 = vpop.permute.xlu0 %182
    %v185 = vmul.f32 %v148, %v153
    %v186 = vmul.f32 %v147, %v158
    %v187 = vmul.f32 %v146, %v163
    %v188 = vmul.f32 %v145, %v168
    %v189 = vmul.f32 %v144, %v173
    %v190 = vmul.f32 %v143, %v178
    %v191 = vmul.f32 %v149, %v183
    %199 = vrot.lane.b32.xlu0 %v69, 32
    %v200 = vpop.permute.xlu0 %199
    %201 = vrot.lane.b32.xlu0 %v70, 32
    %v202 = vpop.permute.xlu0 %201
    %203 = vrot.lane.b32.xlu0 %v71, 32
    %v204 = vpop.permute.xlu0 %203
    %205 = vrot.lane.b32.xlu0 %v72, 32
    %v206 = vpop.permute.xlu0 %205
    %207 = vrot.lane.b32.xlu0 %v73, 32
    %v208 = vpop.permute.xlu0 %207
    %209 = vrot.lane.b32.xlu0 %v74, 32
    %v210 = vpop.permute.xlu0 %209
    %211 = vrot.lane.b32.xlu0 %v75, 32
    %v212 = vpop.permute.xlu0 %211
    %227 = vrot.lane.b32.xlu0 %v185, 64
    %v228 = vpop.permute.xlu0 %227
    %229 = vrot.lane.b32.xlu0 %v186, 64
    %v230 = vpop.permute.xlu0 %229
    %231 = vrot.lane.b32.xlu0 %v187, 64
    %v232 = vpop.permute.xlu0 %231
    %233 = vrot.lane.b32.xlu0 %v188, 64
    %v234 = vpop.permute.xlu0 %233
    %235 = vrot.lane.b32.xlu0 %v189, 64
    %v236 = vpop.permute.xlu0 %235
    %237 = vrot.lane.b32.xlu0 %v190, 64
    %v238 = vpop.permute.xlu0 %237
    %239 = vrot.lane.b32.xlu0 %v191, 64
    %v240 = vpop.permute.xlu0 %239
    %vm248 = vcmask 261120
    %v249 = vsel %vm248, %v128, %v200
    %v250 = vsel %vm248, %v129, %v202
    %v251 = vsel %vm248, %v130, %v204
    %v252 = vsel %vm248, %v131, %v206
    %v253 = vsel %vm248, %v132, %v208
    %v254 = vsel %vm248, %v133, %v210
    %v255 = vsel %vm248, %v134, %v212
    %vm256 = vcmask 523264
    %v257 = vsel %vm256, %v249, %v228
    %v258 = vsel %vm256, %v250, %v230
    %v259 = vsel %vm256, %v251, %v232
    %v260 = vsel %vm256, %v252, %v234
    %v261 = vsel %vm256, %v253, %v236
    %v262 = vsel %vm256, %v254, %v238
    %v263 = vsel %vm256, %v255, %v240
    %v264 = vld [vmem:[%s5] sm:$0xff]
    %v265 = vld [vmem:[%s5 + $0x8] sm:$0xff]
    %v266 = vld [vmem:[%s5 + $0x10] sm:$0xff]
    %v267 = vld [vmem:[%s5 + $0x18] sm:$0xff]
    %v268 = vld [vmem:[%s5 + $0x20] sm:$0xff]
    %v269 = vld [vmem:[%s5 + $0x28] sm:$0xff]
    %v270 = vld [vmem:[%s5 + $0x30] sm:$0xff]
    %v271 = vld [vmem:[%s5 + $0x38] sm:$0xff]
    %v272 = vld [vmem:[%s5 + $0x40] sm:$0xff]
    %v273 = vld [vmem:[%s5 + $0x48] sm:$0xff]
    %v274 = vld [vmem:[%s5 + $0x50] sm:$0xff]
    %v275 = vld [vmem:[%s5 + $0x58] sm:$0xff]
    %v276 = vld [vmem:[%s6] sm:$0x1]
    %v278 = vlaneseq
    %v279 = vshrl.u32 %v278, 7
    %v280 = vsub.s32 0, %v279
    %v281 = vrot.slane %v276, %v280
    %vm283 = vcmask 785408
    %v285 = vsel %vm283, %v257, 0
    %v288 = vsel %vm283, %v258, 0
    %v291 = vsel %vm283, %v259, 0
    %v294 = vsel %vm283, %v260, 0
    %v297 = vsel %vm283, %v261, 0
    %v300 = vsel %vm283, %v262, 0
    %v303 = vsel %vm283, %v263, 0
    %305 = vmatprep.subr.mxu0 0.0
    %306 = vmatpush1.msra.mxu0 %v264
    %307 = vmatprep.subr.mxu0 0.0
    %308 = vmatpush1.msra.mxu0 %v265
    %309 = vmatprep.subr.mxu0 0.0
    %310 = vmatpush1.msra.mxu0 %v266
    %311 = vmatprep.subr.mxu0 0.0
    %312 = vmatpush1.msra.mxu0 %v267
    %313 = vmatprep.subr.mxu0 0.0
    %314 = vmatpush1.msra.mxu0 %v268
    %315 = vmatprep.subr.mxu0 0.0
    %316 = vmatpush1.msra.mxu0 %v269
    %317 = vmatprep.subr.mxu0 0.0
    %318 = vmatpush1.msra.mxu0 %v270
    %319 = vmatprep.subr.mxu0 0.0
    %320 = vmatpush1.msra.mxu0 %v271
    %321 = vmatprep.subr.mxu0 0.0
    %322 = vmatpush1.msra.mxu0 %v272
    %323 = vmatprep.subr.mxu0 0.0
    %324 = vmatpush1.msra.mxu0 %v273
    %325 = vmatprep.subr.mxu0 0.0
    %326 = vmatpush1.msra.mxu0 %v274
    %327 = vmatprep.subr.mxu0 0.0
    %328 = vmatpush1.msra.mxu0 %v275
    %329 = vmatprep.subr.mxu0 0.0
    %330 = vmatpush1.msra.mxu0 0.0
    %331 = vmatprep.subr.mxu0 0.0
    %332 = vmatpush1.msra.mxu0 0.0
    %333 = vmatprep.subr.mxu0 0.0
    %334 = vmatpush1.msra.mxu0 0.0
    %335 = vmatprep.subr.mxu0 0.0
    %336 = vmatpush1.msra.mxu0 0.0
    %337 = vmatprep.subr.mxu0 0.0
    %338 = vmatpush1.msra.mxu0 0.0
    %339 = vmatprep.subr.mxu0 0.0
    %340 = vmatpush1.msra.mxu0 0.0
    %341 = vmatprep.subr.mxu0 0.0
    %342 = vmatpush1.msra.mxu0 0.0
    %343 = vmatprep.subr.mxu0 0.0
    %344 = vmatpush1.msra.mxu0 0.0
    %345 = vmatprep.subr.mxu0 0.0
    %346 = vmatpush1.msra.mxu0 0.0
    %347 = vmatprep.subr.mxu0 0.0
    %348 = vmatpush1.msra.mxu0 0.0
    %349 = vmatprep.subr.mxu0 0.0
    %350 = vmatpush1.msra.mxu0 0.0
    %351 = vmatprep.subr.mxu0 0.0
    %352 = vmatpush1.msra.mxu0 0.0
    %353 = vmatprep.subr.mxu0 0.0
    %354 = vmatpush1.msra.mxu0 0.0
    %355 = vmatprep.subr.mxu0 0.0
    %356 = vmatpush1.msra.mxu0 0.0
    %357 = vmatprep.subr.mxu0 0.0
    %358 = vmatpush1.msra.mxu0 0.0
    %359 = vmatprep.subr.mxu0 0.0
    %360 = vmatpush1.msra.mxu0 0.0
    %361 = vmatprep.subr.mxu0 0.0
    %362 = vmatpush1.msra.mxu0 0.0
    %363 = vmatprep.subr.mxu0 0.0
    %364 = vmatpush1.msra.mxu0 0.0
    %365 = vmatprep.subr.mxu0 0.0
    %366 = vmatpush1.msra.mxu0 0.0
    %367 = vmatprep.subr.mxu0 0.0
    %368 = vmatpush1.msra.mxu0 0.0
    %369 = vmatprep.mubr.f32.mxu0 0.0
    %370 = vmatmul.mubr.f32.gmra.mrb[0].mxu0 %v285
    %v371 = vpop.f32.mrb[0].mxu0
    %v372 = vadd.f32 %v281, %v371
    %v373 = vpop.f32.mrb[0].mxu0
    %374 = vmatprep.mubr.f32.mxu0 0.0
    %375 = vmatmul.mubr.f32.gmra.mrb[0].mxu0 %v288
    %v376 = vpop.f32.mrb[0].mxu0
    %v377 = vadd.f32 %v281, %v376
    %v378 = vpop.f32.mrb[0].mxu0
    %379 = vmatprep.mubr.f32.mxu0 0.0
    %380 = vmatmul.mubr.f32.gmra.mrb[0].mxu0 %v291
    %v381 = vpop.f32.mrb[0].mxu0
    %v382 = vadd.f32 %v281, %v381
    %v383 = vpop.f32.mrb[0].mxu0
    %384 = vmatprep.mubr.f32.mxu0 0.0
    %385 = vmatmul.mubr.f32.gmra.mrb[0].mxu0 %v294
    %v386 = vpop.f32.mrb[0].mxu0
    %v387 = vadd.f32 %v281, %v386
    %v388 = vpop.f32.mrb[0].mxu0
    %389 = vmatprep.mubr.f32.mxu0 0.0
    %390 = vmatmul.mubr.f32.gmra.mrb[0].mxu0 %v297
    %v391 = vpop.f32.mrb[0].mxu0
    %v392 = vadd.f32 %v281, %v391
    %v393 = vpop.f32.mrb[0].mxu0
    %394 = vmatprep.mubr.f32.mxu0 0.0
    %395 = vmatmul.mubr.f32.gmra.mrb[0].mxu0 %v300
    %v396 = vpop.f32.mrb[0].mxu0
    %v397 = vadd.f32 %v281, %v396
    %v398 = vpop.f32.mrb[0].mxu0
    %399 = vmatprep.mubr.f32.mxu0 0.0
    %400 = vmatmul.mubr.f32.gmra.mrb[0].mxu0 %v303
    %v401 = vpop.f32.mrb[0].mxu0
    %v402 = vadd.f32 %v281, %v401
    %v403 = vpop.f32.mrb[0].mxu0
    %404 = vdwg.mxu0
    %406 = vset.pattern.permute.xlu0 0
    %407 = vperm.xlu0 %406, %v48
    %v408 = vpop.permute.xlu0 %407
    %411 = vset.pattern.permute.xlu0 0
    %412 = vperm.xlu0 %411, %v49
    %v413 = vpop.permute.xlu0 %412
    %416 = vset.pattern.permute.xlu0 0
    %417 = vperm.xlu0 %416, %v50
    %v418 = vpop.permute.xlu0 %417
    %421 = vset.pattern.permute.xlu0 0
    %422 = vperm.xlu0 %421, %v51
    %v423 = vpop.permute.xlu0 %422
    %426 = vset.pattern.permute.xlu0 0
    %427 = vperm.xlu0 %426, %v52
    %v428 = vpop.permute.xlu0 %427
    %431 = vset.pattern.permute.xlu0 0
    %432 = vperm.xlu0 %431, %v53
    %v433 = vpop.permute.xlu0 %432
    %436 = vset.pattern.permute.xlu0 0
    %437 = vperm.xlu0 %436, %v54
    %v438 = vpop.permute.xlu0 %437
    %v440 = vmul.f32 %v372, %v408
    %v441 = vmul.f32 %v377, %v413
    %v442 = vmul.f32 %v382, %v418
    %v443 = vmul.f32 %v387, %v423
    %v444 = vmul.f32 %v392, %v428
    %v445 = vmul.f32 %v397, %v433
    %v446 = vmul.f32 %v402, %v438
    %v447 = vmax.f32 %v440, 0.0
    %v448 = vmax.f32 %v441, 0.0
    %v449 = vmax.f32 %v442, 0.0
    %v450 = vmax.f32 %v443, 0.0
    %v451 = vmax.f32 %v444, 0.0
    %v452 = vmax.f32 %v445, 0.0
    %v453 = vmax.f32 %v446, 0.0
    %v454 = vrot.slane %v447, 7
    %v455 = vrot.slane %v448, 7
    %v456 = vrot.slane %v449, 7
    %v457 = vrot.slane %v450, 7
    %v458 = vrot.slane %v451, 7
    %v459 = vrot.slane %v452, 7
    %v460 = vrot.slane %v453, 7
    %v461 = vsel %vm85, %v459, %v460
    %v462 = vsel %vm85, %v458, %v459
    %v463 = vsel %vm85, %v457, %v458
    %v464 = vsel %vm85, %v456, %v457
    %v465 = vsel %vm85, %v455, %v456
    %v466 = vsel %vm85, %v454, %v455
    %v467 = vsel %vm85, %v460, %v454
    %v468 = vmul.f32 %v467, %v96
    %v469 = vmul.f32 %v466, %v101
    %v470 = vmul.f32 %v465, %v106
    %v471 = vmul.f32 %v464, %v111
    %v472 = vmul.f32 %v463, %v116
    %v473 = vmul.f32 %v462, %v121
    %v474 = vmul.f32 %v461, %v126
    %v475 = vrot.slane %v447, 1
    %v476 = vrot.slane %v448, 1
    %v477 = vrot.slane %v449, 1
    %v478 = vrot.slane %v450, 1
    %v479 = vrot.slane %v451, 1
    %v480 = vrot.slane %v452, 1
    %v481 = vrot.slane %v453, 1
    %v482 = vsel %vm142, %v480, %v481
    %v483 = vsel %vm142, %v479, %v480
    %v484 = vsel %vm142, %v478, %v479
    %v485 = vsel %vm142, %v477, %v478
    %v486 = vsel %vm142, %v476, %v477
    %v487 = vsel %vm142, %v475, %v476
    %v488 = vsel %vm142, %v481, %v475
    %v489 = vmul.f32 %v487, %v153
    %v490 = vmul.f32 %v486, %v158
    %v491 = vmul.f32 %v485, %v163
    %v492 = vmul.f32 %v484, %v168
    %v493 = vmul.f32 %v483, %v173
    %v494 = vmul.f32 %v482, %v178
    %v495 = vmul.f32 %v488, %v183
    %503 = vrot.lane.b32.xlu0 %v447, 32
    %v504 = vpop.permute.xlu0 %503
    %505 = vrot.lane.b32.xlu0 %v448, 32
    %v506 = vpop.permute.xlu0 %505
    %507 = vrot.lane.b32.xlu0 %v449, 32
    %v508 = vpop.permute.xlu0 %507
    %509 = vrot.lane.b32.xlu0 %v450, 32
    %v510 = vpop.permute.xlu0 %509
    %511 = vrot.lane.b32.xlu0 %v451, 32
    %v512 = vpop.permute.xlu0 %511
    %513 = vrot.lane.b32.xlu0 %v452, 32
    %v514 = vpop.permute.xlu0 %513
    %515 = vrot.lane.b32.xlu0 %v453, 32
    %v516 = vpop.permute.xlu0 %515
    %531 = vrot.lane.b32.xlu0 %v489, 64
    %v532 = vpop.permute.xlu0 %531
    %533 = vrot.lane.b32.xlu0 %v490, 64
    %v534 = vpop.permute.xlu0 %533
    %535 = vrot.lane.b32.xlu0 %v491, 64
    %v536 = vpop.permute.xlu0 %535
    %537 = vrot.lane.b32.xlu0 %v492, 64
    %v538 = vpop.permute.xlu0 %537
    %539 = vrot.lane.b32.xlu0 %v493, 64
    %v540 = vpop.permute.xlu0 %539
    %541 = vrot.lane.b32.xlu0 %v494, 64
    %v542 = vpop.permute.xlu0 %541
    %543 = vrot.lane.b32.xlu0 %v495, 64
    %v544 = vpop.permute.xlu0 %543
    %v552 = vsel %vm248, %v468, %v504
    %v553 = vsel %vm248, %v469, %v506
    %v554 = vsel %vm248, %v470, %v508
    %v555 = vsel %vm248, %v471, %v510
    %v556 = vsel %vm248, %v472, %v512
    %v557 = vsel %vm248, %v473, %v514
    %v558 = vsel %vm248, %v474, %v516
    %v559 = vsel %vm256, %v552, %v532
    %v560 = vsel %vm256, %v553, %v534
    %v561 = vsel %vm256, %v554, %v536
    %v562 = vsel %vm256, %v555, %v538
    %v563 = vsel %vm256, %v556, %v540
    %v564 = vsel %vm256, %v557, %v542
    %v565 = vsel %vm256, %v558, %v544
    %v566 = vld [vmem:[%s7] sm:$0xff]
    %v567 = vld [vmem:[%s7 + $0x8] sm:$0xff]
    %v568 = vld [vmem:[%s7 + $0x10] sm:$0xff]
    %v569 = vld [vmem:[%s7 + $0x18] sm:$0xff]
    %v570 = vld [vmem:[%s7 + $0x20] sm:$0xff]
    %v571 = vld [vmem:[%s7 + $0x28] sm:$0xff]
    %v572 = vld [vmem:[%s7 + $0x30] sm:$0xff]
    %v573 = vld [vmem:[%s7 + $0x38] sm:$0xff]
    %v574 = vld [vmem:[%s7 + $0x40] sm:$0xff]
    %v575 = vld [vmem:[%s7 + $0x48] sm:$0xff]
    %v576 = vld [vmem:[%s7 + $0x50] sm:$0xff]
    %v577 = vld [vmem:[%s7 + $0x58] sm:$0xff]
    %v578 = vld [vmem:[%s8] sm:$0x1]
    %v580 = vlaneseq
    %v581 = vshrl.u32 %v580, 7
    %v582 = vsub.s32 0, %v581
    %v583 = vrot.slane %v578, %v582
    %v586 = vsel %vm283, %v559, 0
    %v589 = vsel %vm283, %v560, 0
    %v592 = vsel %vm283, %v561, 0
    %v595 = vsel %vm283, %v562, 0
    %v598 = vsel %vm283, %v563, 0
    %v601 = vsel %vm283, %v564, 0
    %v604 = vsel %vm283, %v565, 0
    %606 = vmatprep.subr.mxu0 0.0
    %607 = vmatpush1.msra.mxu0 %v566
    %608 = vmatprep.subr.mxu0 0.0
    %609 = vmatpush1.msra.mxu0 %v567
    %610 = vmatprep.subr.mxu0 0.0
    %611 = vmatpush1.msra.mxu0 %v568
    %612 = vmatprep.subr.mxu0 0.0
    %613 = vmatpush1.msra.mxu0 %v569
    %614 = vmatprep.subr.mxu0 0.0
    %615 = vmatpush1.msra.mxu0 %v570
    %616 = vmatprep.subr.mxu0 0.0
    %617 = vmatpush1.msra.mxu0 %v571
    %618 = vmatprep.subr.mxu0 0.0
    %619 = vmatpush1.msra.mxu0 %v572
    %620 = vmatprep.subr.mxu0 0.0
    %621 = vmatpush1.msra.mxu0 %v573
    %622 = vmatprep.subr.mxu0 0.0
    %623 = vmatpush1.msra.mxu0 %v574
    %624 = vmatprep.subr.mxu0 0.0
    %625 = vmatpush1.msra.mxu0 %v575
    %626 = vmatprep.subr.mxu0 0.0
    %627 = vmatpush1.msra.mxu0 %v576
    %628 = vmatprep.subr.mxu0 0.0
    %629 = vmatpush1.msra.mxu0 %v577
    %630 = vmatprep.subr.mxu0 0.0
    %631 = vmatpush1.msra.mxu0 0.0
    %632 = vmatprep.subr.mxu0 0.0
    %633 = vmatpush1.msra.mxu0 0.0
    %634 = vmatprep.subr.mxu0 0.0
    %635 = vmatpush1.msra.mxu0 0.0
    %636 = vmatprep.subr.mxu0 0.0
    %637 = vmatpush1.msra.mxu0 0.0
    %638 = vmatprep.subr.mxu0 0.0
    %639 = vmatpush1.msra.mxu0 0.0
    %640 = vmatprep.subr.mxu0 0.0
    %641 = vmatpush1.msra.mxu0 0.0
    %642 = vmatprep.subr.mxu0 0.0
    %643 = vmatpush1.msra.mxu0 0.0
    %644 = vmatprep.subr.mxu0 0.0
    %645 = vmatpush1.msra.mxu0 0.0
    %646 = vmatprep.subr.mxu0 0.0
    %647 = vmatpush1.msra.mxu0 0.0
    %648 = vmatprep.subr.mxu0 0.0
    %649 = vmatpush1.msra.mxu0 0.0
    %650 = vmatprep.subr.mxu0 0.0
    %651 = vmatpush1.msra.mxu0 0.0
    %652 = vmatprep.subr.mxu0 0.0
    %653 = vmatpush1.msra.mxu0 0.0
    %654 = vmatprep.subr.mxu0 0.0
    %655 = vmatpush1.msra.mxu0 0.0
    %656 = vmatprep.subr.mxu0 0.0
    %657 = vmatpush1.msra.mxu0 0.0
    %658 = vmatprep.subr.mxu0 0.0
    %659 = vmatpush1.msra.mxu0 0.0
    %660 = vmatprep.subr.mxu0 0.0
    %661 = vmatpush1.msra.mxu0 0.0
    %662 = vmatprep.subr.mxu0 0.0
    %663 = vmatpush1.msra.mxu0 0.0
    %664 = vmatprep.subr.mxu0 0.0
    %665 = vmatpush1.msra.mxu0 0.0
    %666 = vmatprep.subr.mxu0 0.0
    %667 = vmatpush1.msra.mxu0 0.0
    %668 = vmatprep.subr.mxu0 0.0
    %669 = vmatpush1.msra.mxu0 0.0
    %670 = vmatprep.mubr.f32.mxu0 0.0
    %671 = vmatmul.mubr.f32.gmra.mrb[0].mxu0 %v586
    %v672 = vpop.f32.mrb[0].mxu0
    %v673 = vadd.f32 %v583, %v672
    %v674 = vpop.f32.mrb[0].mxu0
    %675 = vmatprep.mubr.f32.mxu0 0.0
    %676 = vmatmul.mubr.f32.gmra.mrb[0].mxu0 %v589
    %v677 = vpop.f32.mrb[0].mxu0
    %v678 = vadd.f32 %v583, %v677
    %v679 = vpop.f32.mrb[0].mxu0
    %680 = vmatprep.mubr.f32.mxu0 0.0
    %681 = vmatmul.mubr.f32.gmra.mrb[0].mxu0 %v592
    %v682 = vpop.f32.mrb[0].mxu0
    %v683 = vadd.f32 %v583, %v682
    %v684 = vpop.f32.mrb[0].mxu0
    %685 = vmatprep.mubr.f32.mxu0 0.0
    %686 = vmatmul.mubr.f32.gmra.mrb[0].mxu0 %v595
    %v687 = vpop.f32.mrb[0].mxu0
    %v688 = vadd.f32 %v583, %v687
    %v689 = vpop.f32.mrb[0].mxu0
    %690 = vmatprep.mubr.f32.mxu0 0.0
    %691 = vmatmul.mubr.f32.gmra.mrb[0].mxu0 %v598
    %v692 = vpop.f32.mrb[0].mxu0
    %v693 = vadd.f32 %v583, %v692
    %v694 = vpop.f32.mrb[0].mxu0
    %695 = vmatprep.mubr.f32.mxu0 0.0
    %696 = vmatmul.mubr.f32.gmra.mrb[0].mxu0 %v601
    %v697 = vpop.f32.mrb[0].mxu0
    %v698 = vadd.f32 %v583, %v697
    %v699 = vpop.f32.mrb[0].mxu0
    %700 = vmatprep.mubr.f32.mxu0 0.0
    %701 = vmatmul.mubr.f32.gmra.mrb[0].mxu0 %v604
    %v702 = vpop.f32.mrb[0].mxu0
    %v703 = vadd.f32 %v583, %v702
    %v704 = vpop.f32.mrb[0].mxu0
    %705 = vdwg.mxu0
    %v706 = vmul.f32 %v673, %v408
    %v707 = vmul.f32 %v678, %v413
    %v708 = vmul.f32 %v683, %v418
    %v709 = vmul.f32 %v688, %v423
    %v710 = vmul.f32 %v693, %v428
    %v711 = vmul.f32 %v698, %v433
    %v712 = vmul.f32 %v703, %v438
    %v713 = vmax.f32 %v706, 0.0
    %v714 = vmax.f32 %v707, 0.0
    %v715 = vmax.f32 %v708, 0.0
    %v716 = vmax.f32 %v709, 0.0
    %v717 = vmax.f32 %v710, 0.0
    %v718 = vmax.f32 %v711, 0.0
    %v719 = vmax.f32 %v712, 0.0
    %720 = vrot.lane.b32.xlu0 %v447, 96
    %v721 = vpop.permute.xlu0 %720
    %722 = vrot.lane.b32.xlu0 %v448, 96
    %v723 = vpop.permute.xlu0 %722
    %724 = vrot.lane.b32.xlu0 %v449, 96
    %v725 = vpop.permute.xlu0 %724
    %726 = vrot.lane.b32.xlu0 %v450, 96
    %v727 = vpop.permute.xlu0 %726
    %728 = vrot.lane.b32.xlu0 %v451, 96
    %v729 = vpop.permute.xlu0 %728
    %730 = vrot.lane.b32.xlu0 %v452, 96
    %v731 = vpop.permute.xlu0 %730
    %732 = vrot.lane.b32.xlu0 %v453, 96
    %v733 = vpop.permute.xlu0 %732
    %v741 = vrot.slane %v721, 7
    %v742 = vrot.slane %v723, 7
    %v743 = vrot.slane %v725, 7
    %v744 = vrot.slane %v727, 7
    %v745 = vrot.slane %v729, 7
    %v746 = vrot.slane %v731, 7
    %v747 = vrot.slane %v733, 7
    %v748 = vsel %vm85, %v746, %v747
    %v749 = vsel %vm85, %v745, %v746
    %v750 = vsel %vm85, %v744, %v745
    %v751 = vsel %vm85, %v743, %v744
    %v752 = vsel %vm85, %v742, %v743
    %v753 = vsel %vm85, %v741, %v742
    %v754 = vsel %vm85, %v747, %v741
    %v755 = vmul.f32 %v754, %v96
    %v756 = vmul.f32 %v753, %v101
    %v757 = vmul.f32 %v752, %v106
    %v758 = vmul.f32 %v751, %v111
    %v759 = vmul.f32 %v750, %v116
    %v760 = vmul.f32 %v749, %v121
    %v761 = vmul.f32 %v748, %v126
    %v762 = vrot.slane %v721, 1
    %v763 = vrot.slane %v723, 1
    %v764 = vrot.slane %v725, 1
    %v765 = vrot.slane %v727, 1
    %v766 = vrot.slane %v729, 1
    %v767 = vrot.slane %v731, 1
    %v768 = vrot.slane %v733, 1
    %v769 = vsel %vm142, %v767, %v768
    %v770 = vsel %vm142, %v766, %v767
    %v771 = vsel %vm142, %v765, %v766
    %v772 = vsel %vm142, %v764, %v765
    %v773 = vsel %vm142, %v763, %v764
    %v774 = vsel %vm142, %v762, %v763
    %v775 = vsel %vm142, %v768, %v762
    %v776 = vmul.f32 %v774, %v153
    %v777 = vmul.f32 %v773, %v158
    %v778 = vmul.f32 %v772, %v163
    %v779 = vmul.f32 %v771, %v168
    %v780 = vmul.f32 %v770, %v173
    %v781 = vmul.f32 %v769, %v178
    %v782 = vmul.f32 %v775, %v183
    %790 = vrot.lane.b32.xlu0 %v776, 64
    %v791 = vpop.permute.xlu0 %790
    %792 = vrot.lane.b32.xlu0 %v777, 64
    %v793 = vpop.permute.xlu0 %792
    %794 = vrot.lane.b32.xlu0 %v778, 64
    %v795 = vpop.permute.xlu0 %794
    %796 = vrot.lane.b32.xlu0 %v779, 64
    %v797 = vpop.permute.xlu0 %796
    %798 = vrot.lane.b32.xlu0 %v780, 64
    %v799 = vpop.permute.xlu0 %798
    %800 = vrot.lane.b32.xlu0 %v781, 64
    %v801 = vpop.permute.xlu0 %800
    %802 = vrot.lane.b32.xlu0 %v782, 64
    %v803 = vpop.permute.xlu0 %802
    %v811 = vsel %vm248, %v755, %v447
    %v812 = vsel %vm248, %v756, %v448
    %v813 = vsel %vm248, %v757, %v449
    %v814 = vsel %vm248, %v758, %v450
    %v815 = vsel %vm248, %v759, %v451
    %v816 = vsel %vm248, %v760, %v452
    %v817 = vsel %vm248, %v761, %v453
    %v818 = vsel %vm256, %v811, %v791
    %v819 = vsel %vm256, %v812, %v793
    %v820 = vsel %vm256, %v813, %v795
    %v821 = vsel %vm256, %v814, %v797
    %v822 = vsel %vm256, %v815, %v799
    %v823 = vsel %vm256, %v816, %v801
    %v824 = vsel %vm256, %v817, %v803
    %v825 = vld [vmem:[%s9] sm:$0xff]
    %v826 = vld [vmem:[%s9 + $0x8] sm:$0xff]
    %v827 = vld [vmem:[%s9 + $0x10] sm:$0xff]
    %v828 = vld [vmem:[%s9 + $0x18] sm:$0xff]
    %v829 = vld [vmem:[%s9 + $0x20] sm:$0xff]
    %v830 = vld [vmem:[%s9 + $0x28] sm:$0xff]
    %v831 = vld [vmem:[%s9 + $0x30] sm:$0xff]
    %v832 = vld [vmem:[%s9 + $0x38] sm:$0xff]
    %v833 = vld [vmem:[%s9 + $0x40] sm:$0xff]
    %v834 = vld [vmem:[%s9 + $0x48] sm:$0xff]
    %v835 = vld [vmem:[%s9 + $0x50] sm:$0xff]
    %v836 = vld [vmem:[%s9 + $0x58] sm:$0xff]
    %v837 = vld [vmem:[%s10] sm:$0x1]
    %v839 = vlaneseq
    %v840 = vshrl.u32 %v839, 7
    %v841 = vsub.s32 0, %v840
    %v842 = vrot.slane %v837, %v841
    %v845 = vsel %vm283, %v818, 0
    %v848 = vsel %vm283, %v819, 0
    %v851 = vsel %vm283, %v820, 0
    %v854 = vsel %vm283, %v821, 0
    %v857 = vsel %vm283, %v822, 0
    %v860 = vsel %vm283, %v823, 0
    %v863 = vsel %vm283, %v824, 0
    %865 = vmatprep.subr.mxu0 0.0
    %866 = vmatpush1.msra.mxu0 %v825
    %867 = vmatprep.subr.mxu0 0.0
    %868 = vmatpush1.msra.mxu0 %v826
    %869 = vmatprep.subr.mxu0 0.0
    %870 = vmatpush1.msra.mxu0 %v827
    %871 = vmatprep.subr.mxu0 0.0
    %872 = vmatpush1.msra.mxu0 %v828
    %873 = vmatprep.subr.mxu0 0.0
    %874 = vmatpush1.msra.mxu0 %v829
    %875 = vmatprep.subr.mxu0 0.0
    %876 = vmatpush1.msra.mxu0 %v830
    %877 = vmatprep.subr.mxu0 0.0
    %878 = vmatpush1.msra.mxu0 %v831
    %879 = vmatprep.subr.mxu0 0.0
    %880 = vmatpush1.msra.mxu0 %v832
    %881 = vmatprep.subr.mxu0 0.0
    %882 = vmatpush1.msra.mxu0 %v833
    %883 = vmatprep.subr.mxu0 0.0
    %884 = vmatpush1.msra.mxu0 %v834
    %885 = vmatprep.subr.mxu0 0.0
    %886 = vmatpush1.msra.mxu0 %v835
    %887 = vmatprep.subr.mxu0 0.0
    %888 = vmatpush1.msra.mxu0 %v836
    %889 = vmatprep.subr.mxu0 0.0
    %890 = vmatpush1.msra.mxu0 0.0
    %891 = vmatprep.subr.mxu0 0.0
    %892 = vmatpush1.msra.mxu0 0.0
    %893 = vmatprep.subr.mxu0 0.0
    %894 = vmatpush1.msra.mxu0 0.0
    %895 = vmatprep.subr.mxu0 0.0
    %896 = vmatpush1.msra.mxu0 0.0
    %897 = vmatprep.subr.mxu0 0.0
    %898 = vmatpush1.msra.mxu0 0.0
    %899 = vmatprep.subr.mxu0 0.0
    %900 = vmatpush1.msra.mxu0 0.0
    %901 = vmatprep.subr.mxu0 0.0
    %902 = vmatpush1.msra.mxu0 0.0
    %903 = vmatprep.subr.mxu0 0.0
    %904 = vmatpush1.msra.mxu0 0.0
    %905 = vmatprep.subr.mxu0 0.0
    %906 = vmatpush1.msra.mxu0 0.0
    %907 = vmatprep.subr.mxu0 0.0
    %908 = vmatpush1.msra.mxu0 0.0
    %909 = vmatprep.subr.mxu0 0.0
    %910 = vmatpush1.msra.mxu0 0.0
    %911 = vmatprep.subr.mxu0 0.0
    %912 = vmatpush1.msra.mxu0 0.0
    %913 = vmatprep.subr.mxu0 0.0
    %914 = vmatpush1.msra.mxu0 0.0
    %915 = vmatprep.subr.mxu0 0.0
    %916 = vmatpush1.msra.mxu0 0.0
    %917 = vmatprep.subr.mxu0 0.0
    %918 = vmatpush1.msra.mxu0 0.0
    %919 = vmatprep.subr.mxu0 0.0
    %920 = vmatpush1.msra.mxu0 0.0
    %921 = vmatprep.subr.mxu0 0.0
    %922 = vmatpush1.msra.mxu0 0.0
    %923 = vmatprep.subr.mxu0 0.0
    %924 = vmatpush1.msra.mxu0 0.0
    %925 = vmatprep.subr.mxu0 0.0
    %926 = vmatpush1.msra.mxu0 0.0
    %927 = vmatprep.subr.mxu0 0.0
    %928 = vmatpush1.msra.mxu0 0.0
    %929 = vmatprep.mubr.f32.mxu0 0.0
    %930 = vmatmul.mubr.f32.gmra.mrb[0].mxu0 %v845
    %v931 = vpop.f32.mrb[0].mxu0
    %v932 = vadd.f32 %v842, %v931
    %v933 = vpop.f32.mrb[0].mxu0
    %934 = vmatprep.mubr.f32.mxu0 0.0
    %935 = vmatmul.mubr.f32.gmra.mrb[0].mxu0 %v848
    %v936 = vpop.f32.mrb[0].mxu0
    %v937 = vadd.f32 %v842, %v936
    %v938 = vpop.f32.mrb[0].mxu0
    %939 = vmatprep.mubr.f32.mxu0 0.0
    %940 = vmatmul.mubr.f32.gmra.mrb[0].mxu0 %v851
    %v941 = vpop.f32.mrb[0].mxu0
    %v942 = vadd.f32 %v842, %v941
    %v943 = vpop.f32.mrb[0].mxu0
    %944 = vmatprep.mubr.f32.mxu0 0.0
    %945 = vmatmul.mubr.f32.gmra.mrb[0].mxu0 %v854
    %v946 = vpop.f32.mrb[0].mxu0
    %v947 = vadd.f32 %v842, %v946
    %v948 = vpop.f32.mrb[0].mxu0
    %949 = vmatprep.mubr.f32.mxu0 0.0
    %950 = vmatmul.mubr.f32.gmra.mrb[0].mxu0 %v857
    %v951 = vpop.f32.mrb[0].mxu0
    %v952 = vadd.f32 %v842, %v951
    %v953 = vpop.f32.mrb[0].mxu0
    %954 = vmatprep.mubr.f32.mxu0 0.0
    %955 = vmatmul.mubr.f32.gmra.mrb[0].mxu0 %v860
    %v956 = vpop.f32.mrb[0].mxu0
    %v957 = vadd.f32 %v842, %v956
    %v958 = vpop.f32.mrb[0].mxu0
    %959 = vmatprep.mubr.f32.mxu0 0.0
    %960 = vmatmul.mubr.f32.gmra.mrb[0].mxu0 %v863
    %v961 = vpop.f32.mrb[0].mxu0
    %v962 = vadd.f32 %v842, %v961
    %v963 = vpop.f32.mrb[0].mxu0
    %964 = vdwg.mxu0
    %v965 = vmul.f32 %v932, %v408
    %v966 = vmul.f32 %v937, %v413
    %v967 = vmul.f32 %v942, %v418
    %v968 = vmul.f32 %v947, %v423
    %v969 = vmul.f32 %v952, %v428
    %v970 = vmul.f32 %v957, %v433
    %v971 = vmul.f32 %v962, %v438
    %v972 = vmax.f32 %v965, 0.0
    %v973 = vmax.f32 %v966, 0.0
    %v974 = vmax.f32 %v967, 0.0
    %v975 = vmax.f32 %v968, 0.0
    %v976 = vmax.f32 %v969, 0.0
    %v977 = vmax.f32 %v970, 0.0
    %v978 = vmax.f32 %v971, 0.0
    %v979 = vrot.slane %v713, 7
    %v980 = vrot.slane %v714, 7
    %v981 = vrot.slane %v715, 7
    %v982 = vrot.slane %v716, 7
    %v983 = vrot.slane %v717, 7
    %v984 = vrot.slane %v718, 7
    %v985 = vrot.slane %v719, 7
    %v986 = vsel %vm85, %v984, %v985
    %v987 = vsel %vm85, %v983, %v984
    %v988 = vsel %vm85, %v982, %v983
    %v989 = vsel %vm85, %v981, %v982
    %v990 = vsel %vm85, %v980, %v981
    %v991 = vsel %vm85, %v979, %v980
    %v992 = vsel %vm85, %v985, %v979
    %v993 = vmul.f32 %v992, %v96
    %v994 = vmul.f32 %v991, %v101
    %v995 = vmul.f32 %v990, %v106
    %v996 = vmul.f32 %v989, %v111
    %v997 = vmul.f32 %v988, %v116
    %v998 = vmul.f32 %v987, %v121
    %v999 = vmul.f32 %v986, %v126
    %v1000 = vrot.slane %v713, 1
    %v1001 = vrot.slane %v714, 1
    %v1002 = vrot.slane %v715, 1
    %v1003 = vrot.slane %v716, 1
    %v1004 = vrot.slane %v717, 1
    %v1005 = vrot.slane %v718, 1
    %v1006 = vrot.slane %v719, 1
    %v1007 = vsel %vm142, %v1005, %v1006
    %v1008 = vsel %vm142, %v1004, %v1005
    %v1009 = vsel %vm142, %v1003, %v1004
    %v1010 = vsel %vm142, %v1002, %v1003
    %v1011 = vsel %vm142, %v1001, %v1002
    %v1012 = vsel %vm142, %v1000, %v1001
    %v1013 = vsel %vm142, %v1006, %v1000
    %v1014 = vmul.f32 %v1012, %v153
    %v1015 = vmul.f32 %v1011, %v158
    %v1016 = vmul.f32 %v1010, %v163
    %v1017 = vmul.f32 %v1009, %v168
    %v1018 = vmul.f32 %v1008, %v173
    %v1019 = vmul.f32 %v1007, %v178
    %v1020 = vmul.f32 %v1013, %v183
    %1028 = vrot.lane.b32.xlu0 %v713, 32
    %v1029 = vpop.permute.xlu0 %1028
    %1030 = vrot.lane.b32.xlu0 %v714, 32
    %v1031 = vpop.permute.xlu0 %1030
    %1032 = vrot.lane.b32.xlu0 %v715, 32
    %v1033 = vpop.permute.xlu0 %1032
    %1034 = vrot.lane.b32.xlu0 %v716, 32
    %v1035 = vpop.permute.xlu0 %1034
    %1036 = vrot.lane.b32.xlu0 %v717, 32
    %v1037 = vpop.permute.xlu0 %1036
    %1038 = vrot.lane.b32.xlu0 %v718, 32
    %v1039 = vpop.permute.xlu0 %1038
    %1040 = vrot.lane.b32.xlu0 %v719, 32
    %v1041 = vpop.permute.xlu0 %1040
    %1056 = vrot.lane.b32.xlu0 %v1014, 64
    %v1057 = vpop.permute.xlu0 %1056
    %1058 = vrot.lane.b32.xlu0 %v1015, 64
    %v1059 = vpop.permute.xlu0 %1058
    %1060 = vrot.lane.b32.xlu0 %v1016, 64
    %v1061 = vpop.permute.xlu0 %1060
    %1062 = vrot.lane.b32.xlu0 %v1017, 64
    %v1063 = vpop.permute.xlu0 %1062
    %1064 = vrot.lane.b32.xlu0 %v1018, 64
    %v1065 = vpop.permute.xlu0 %1064
    %1066 = vrot.lane.b32.xlu0 %v1019, 64
    %v1067 = vpop.permute.xlu0 %1066
    %1068 = vrot.lane.b32.xlu0 %v1020, 64
    %v1069 = vpop.permute.xlu0 %1068
    %v1077 = vsel %vm248, %v993, %v1029
    %v1078 = vsel %vm248, %v994, %v1031
    %v1079 = vsel %vm248, %v995, %v1033
    %v1080 = vsel %vm248, %v996, %v1035
    %v1081 = vsel %vm248, %v997, %v1037
    %v1082 = vsel %vm248, %v998, %v1039
    %v1083 = vsel %vm248, %v999, %v1041
    %v1084 = vsel %vm256, %v1077, %v1057
    %v1085 = vsel %vm256, %v1078, %v1059
    %v1086 = vsel %vm256, %v1079, %v1061
    %v1087 = vsel %vm256, %v1080, %v1063
    %v1088 = vsel %vm256, %v1081, %v1065
    %v1089 = vsel %vm256, %v1082, %v1067
    %v1090 = vsel %vm256, %v1083, %v1069
    %v1091 = vld [vmem:[%s11] sm:$0xff]
    %v1092 = vld [vmem:[%s11 + $0x8] sm:$0xff]
    %v1093 = vld [vmem:[%s11 + $0x10] sm:$0xff]
    %v1094 = vld [vmem:[%s11 + $0x18] sm:$0xff]
    %v1095 = vld [vmem:[%s11 + $0x20] sm:$0xff]
    %v1096 = vld [vmem:[%s11 + $0x28] sm:$0xff]
    %v1097 = vld [vmem:[%s11 + $0x30] sm:$0xff]
    %v1098 = vld [vmem:[%s11 + $0x38] sm:$0xff]
    %v1099 = vld [vmem:[%s11 + $0x40] sm:$0xff]
    %v1100 = vld [vmem:[%s11 + $0x48] sm:$0xff]
    %v1101 = vld [vmem:[%s11 + $0x50] sm:$0xff]
    %v1102 = vld [vmem:[%s11 + $0x58] sm:$0xff]
    %v1103 = vrot.slane %v972, 7
    %v1104 = vrot.slane %v973, 7
    %v1105 = vrot.slane %v974, 7
    %v1106 = vrot.slane %v975, 7
    %v1107 = vrot.slane %v976, 7
    %v1108 = vrot.slane %v977, 7
    %v1109 = vrot.slane %v978, 7
    %v1110 = vsel %vm85, %v1108, %v1109
    %v1111 = vsel %vm85, %v1107, %v1108
    %v1112 = vsel %vm85, %v1106, %v1107
    %v1113 = vsel %vm85, %v1105, %v1106
    %v1114 = vsel %vm85, %v1104, %v1105
    %v1115 = vsel %vm85, %v1103, %v1104
    %v1116 = vsel %vm85, %v1109, %v1103
    %v1117 = vmul.f32 %v1116, %v96
    %v1118 = vmul.f32 %v1115, %v101
    %v1119 = vmul.f32 %v1114, %v106
    %v1120 = vmul.f32 %v1113, %v111
    %v1121 = vmul.f32 %v1112, %v116
    %v1122 = vmul.f32 %v1111, %v121
    %v1123 = vmul.f32 %v1110, %v126
    %v1124 = vrot.slane %v972, 1
    %v1125 = vrot.slane %v973, 1
    %v1126 = vrot.slane %v974, 1
    %v1127 = vrot.slane %v975, 1
    %v1128 = vrot.slane %v976, 1
    %v1129 = vrot.slane %v977, 1
    %v1130 = vrot.slane %v978, 1
    %v1131 = vsel %vm142, %v1129, %v1130
    %v1132 = vsel %vm142, %v1128, %v1129
    %v1133 = vsel %vm142, %v1127, %v1128
    %v1134 = vsel %vm142, %v1126, %v1127
    %v1135 = vsel %vm142, %v1125, %v1126
    %v1136 = vsel %vm142, %v1124, %v1125
    %v1137 = vsel %vm142, %v1130, %v1124
    %v1138 = vmul.f32 %v1136, %v153
    %v1139 = vmul.f32 %v1135, %v158
    %v1140 = vmul.f32 %v1134, %v163
    %v1141 = vmul.f32 %v1133, %v168
    %v1142 = vmul.f32 %v1132, %v173
    %v1143 = vmul.f32 %v1131, %v178
    %v1144 = vmul.f32 %v1137, %v183
    %1152 = vrot.lane.b32.xlu0 %v972, 32
    %v1153 = vpop.permute.xlu0 %1152
    %1154 = vrot.lane.b32.xlu0 %v973, 32
    %v1155 = vpop.permute.xlu0 %1154
    %1156 = vrot.lane.b32.xlu0 %v974, 32
    %v1157 = vpop.permute.xlu0 %1156
    %1158 = vrot.lane.b32.xlu0 %v975, 32
    %v1159 = vpop.permute.xlu0 %1158
    %1160 = vrot.lane.b32.xlu0 %v976, 32
    %v1161 = vpop.permute.xlu0 %1160
    %1162 = vrot.lane.b32.xlu0 %v977, 32
    %v1163 = vpop.permute.xlu0 %1162
    %1164 = vrot.lane.b32.xlu0 %v978, 32
    %v1165 = vpop.permute.xlu0 %1164
    %1180 = vrot.lane.b32.xlu0 %v1138, 64
    %v1181 = vpop.permute.xlu0 %1180
    %1182 = vrot.lane.b32.xlu0 %v1139, 64
    %v1183 = vpop.permute.xlu0 %1182
    %1184 = vrot.lane.b32.xlu0 %v1140, 64
    %v1185 = vpop.permute.xlu0 %1184
    %1186 = vrot.lane.b32.xlu0 %v1141, 64
    %v1187 = vpop.permute.xlu0 %1186
    %1188 = vrot.lane.b32.xlu0 %v1142, 64
    %v1189 = vpop.permute.xlu0 %1188
    %1190 = vrot.lane.b32.xlu0 %v1143, 64
    %v1191 = vpop.permute.xlu0 %1190
    %1192 = vrot.lane.b32.xlu0 %v1144, 64
    %v1193 = vpop.permute.xlu0 %1192
    %v1201 = vsel %vm248, %v1117, %v1153
    %v1202 = vsel %vm248, %v1118, %v1155
    %v1203 = vsel %vm248, %v1119, %v1157
    %v1204 = vsel %vm248, %v1120, %v1159
    %v1205 = vsel %vm248, %v1121, %v1161
    %v1206 = vsel %vm248, %v1122, %v1163
    %v1207 = vsel %vm248, %v1123, %v1165
    %v1208 = vsel %vm256, %v1201, %v1181
    %v1209 = vsel %vm256, %v1202, %v1183
    %v1210 = vsel %vm256, %v1203, %v1185
    %v1211 = vsel %vm256, %v1204, %v1187
    %v1212 = vsel %vm256, %v1205, %v1189
    %v1213 = vsel %vm256, %v1206, %v1191
    %v1214 = vsel %vm256, %v1207, %v1193
    %v1215 = vld [vmem:[%s12] sm:$0xff]
    %v1216 = vld [vmem:[%s12 + $0x8] sm:$0xff]
    %v1217 = vld [vmem:[%s12 + $0x10] sm:$0xff]
    %v1218 = vld [vmem:[%s12 + $0x18] sm:$0xff]
    %v1219 = vld [vmem:[%s12 + $0x20] sm:$0xff]
    %v1220 = vld [vmem:[%s12 + $0x28] sm:$0xff]
    %v1221 = vld [vmem:[%s12 + $0x30] sm:$0xff]
    %v1222 = vld [vmem:[%s12 + $0x38] sm:$0xff]
    %v1223 = vld [vmem:[%s12 + $0x40] sm:$0xff]
    %v1224 = vld [vmem:[%s12 + $0x48] sm:$0xff]
    %v1225 = vld [vmem:[%s12 + $0x50] sm:$0xff]
    %v1226 = vld [vmem:[%s12 + $0x58] sm:$0xff]
    %v1228 = vsel %vm283, %v1208, 0
    %v1231 = vsel %vm283, %v1209, 0
    %v1234 = vsel %vm283, %v1210, 0
    %v1237 = vsel %vm283, %v1211, 0
    %v1240 = vsel %vm283, %v1212, 0
    %v1243 = vsel %vm283, %v1213, 0
    %v1246 = vsel %vm283, %v1214, 0
    %1248 = vmatprep.subr.mxu0 0.0
    %1249 = vmatpush1.msra.mxu0 %v1215
    %1250 = vmatprep.subr.mxu0 0.0
    %1251 = vmatpush1.msra.mxu0 %v1216
    %1252 = vmatprep.subr.mxu0 0.0
    %1253 = vmatpush1.msra.mxu0 %v1217
    %1254 = vmatprep.subr.mxu0 0.0
    %1255 = vmatpush1.msra.mxu0 %v1218
    %1256 = vmatprep.subr.mxu0 0.0
    %1257 = vmatpush1.msra.mxu0 %v1219
    %1258 = vmatprep.subr.mxu0 0.0
    %1259 = vmatpush1.msra.mxu0 %v1220
    %1260 = vmatprep.subr.mxu0 0.0
    %1261 = vmatpush1.msra.mxu0 %v1221
    %1262 = vmatprep.subr.mxu0 0.0
    %1263 = vmatpush1.msra.mxu0 %v1222
    %1264 = vmatprep.subr.mxu0 0.0
    %1265 = vmatpush1.msra.mxu0 %v1223
    %1266 = vmatprep.subr.mxu0 0.0
    %1267 = vmatpush1.msra.mxu0 %v1224
    %1268 = vmatprep.subr.mxu0 0.0
    %1269 = vmatpush1.msra.mxu0 %v1225
    %1270 = vmatprep.subr.mxu0 0.0
    %1271 = vmatpush1.msra.mxu0 %v1226
    %1272 = vmatprep.subr.mxu0 0.0
    %1273 = vmatpush1.msra.mxu0 0.0
    %1274 = vmatprep.subr.mxu0 0.0
    %1275 = vmatpush1.msra.mxu0 0.0
    %1276 = vmatprep.subr.mxu0 0.0
    %1277 = vmatpush1.msra.mxu0 0.0
    %1278 = vmatprep.subr.mxu0 0.0
    %1279 = vmatpush1.msra.mxu0 0.0
    %1280 = vmatprep.subr.mxu0 0.0
    %1281 = vmatpush1.msra.mxu0 0.0
    %1282 = vmatprep.subr.mxu0 0.0
    %1283 = vmatpush1.msra.mxu0 0.0
    %1284 = vmatprep.subr.mxu0 0.0
    %1285 = vmatpush1.msra.mxu0 0.0
    %1286 = vmatprep.subr.mxu0 0.0
    %1287 = vmatpush1.msra.mxu0 0.0
    %1288 = vmatprep.subr.mxu0 0.0
    %1289 = vmatpush1.msra.mxu0 0.0
    %1290 = vmatprep.subr.mxu0 0.0
    %1291 = vmatpush1.msra.mxu0 0.0
    %1292 = vmatprep.subr.mxu0 0.0
    %1293 = vmatpush1.msra.mxu0 0.0
    %1294 = vmatprep.subr.mxu0 0.0
    %1295 = vmatpush1.msra.mxu0 0.0
    %1296 = vmatprep.subr.mxu0 0.0
    %1297 = vmatpush1.msra.mxu0 0.0
    %1298 = vmatprep.subr.mxu0 0.0
    %1299 = vmatpush1.msra.mxu0 0.0
    %1300 = vmatprep.subr.mxu0 0.0
    %1301 = vmatpush1.msra.mxu0 0.0
    %1302 = vmatprep.subr.mxu0 0.0
    %1303 = vmatpush1.msra.mxu0 0.0
    %1304 = vmatprep.subr.mxu0 0.0
    %1305 = vmatpush1.msra.mxu0 0.0
    %1306 = vmatprep.subr.mxu0 0.0
    %1307 = vmatpush1.msra.mxu0 0.0
    %1308 = vmatprep.subr.mxu0 0.0
    %1309 = vmatpush1.msra.mxu0 0.0
    %1310 = vmatprep.subr.mxu0 0.0
    %1311 = vmatpush1.msra.mxu0 0.0
    %1312 = vmatprep.mubr.f32.mxu0 0.0
    %1313 = vmatmul.mubr.f32.gmra.mrb[0].mxu0 %v1228
    %v1314 = vpop.f32.mrb[0].mxu0
    %v1315 = vadd.f32 0.0, %v1314
    %v1316 = vpop.f32.mrb[0].mxu0
    %1317 = vmatprep.mubr.f32.mxu0 0.0
    %1318 = vmatmul.mubr.f32.gmra.mrb[0].mxu0 %v1231
    %v1319 = vpop.f32.mrb[0].mxu0
    %v1320 = vadd.f32 0.0, %v1319
    %v1321 = vpop.f32.mrb[0].mxu0
    %1322 = vmatprep.mubr.f32.mxu0 0.0
    %1323 = vmatmul.mubr.f32.gmra.mrb[0].mxu0 %v1234
    %v1324 = vpop.f32.mrb[0].mxu0
    %v1325 = vadd.f32 0.0, %v1324
    %v1326 = vpop.f32.mrb[0].mxu0
    %1327 = vmatprep.mubr.f32.mxu0 0.0
    %1328 = vmatmul.mubr.f32.gmra.mrb[0].mxu0 %v1237
    %v1329 = vpop.f32.mrb[0].mxu0
    %v1330 = vadd.f32 0.0, %v1329
    %v1331 = vpop.f32.mrb[0].mxu0
    %1332 = vmatprep.mubr.f32.mxu0 0.0
    %1333 = vmatmul.mubr.f32.gmra.mrb[0].mxu0 %v1240
    %v1334 = vpop.f32.mrb[0].mxu0
    %v1335 = vadd.f32 0.0, %v1334
    %v1336 = vpop.f32.mrb[0].mxu0
    %1337 = vmatprep.mubr.f32.mxu0 0.0
    %1338 = vmatmul.mubr.f32.gmra.mrb[0].mxu0 %v1243
    %v1339 = vpop.f32.mrb[0].mxu0
    %v1340 = vadd.f32 0.0, %v1339
    %v1341 = vpop.f32.mrb[0].mxu0
    %1342 = vmatprep.mubr.f32.mxu0 0.0
    %1343 = vmatmul.mubr.f32.gmra.mrb[0].mxu0 %v1246
    %v1344 = vpop.f32.mrb[0].mxu0
    %v1345 = vadd.f32 0.0, %v1344
    %v1346 = vpop.f32.mrb[0].mxu0
    %1347 = vdwg.mxu0
    %v1349 = vsel %vm283, %v1084, 0
    %v1352 = vsel %vm283, %v1085, 0
    %v1355 = vsel %vm283, %v1086, 0
    %v1358 = vsel %vm283, %v1087, 0
    %v1361 = vsel %vm283, %v1088, 0
    %v1364 = vsel %vm283, %v1089, 0
    %v1367 = vsel %vm283, %v1090, 0
    %1369 = vmatprep.subr.mxu0 0.0
    %1370 = vmatpush1.msra.mxu0 %v1091
    %1371 = vmatprep.subr.mxu0 0.0
    %1372 = vmatpush1.msra.mxu0 %v1092
    %1373 = vmatprep.subr.mxu0 0.0
    %1374 = vmatpush1.msra.mxu0 %v1093
    %1375 = vmatprep.subr.mxu0 0.0
    %1376 = vmatpush1.msra.mxu0 %v1094
    %1377 = vmatprep.subr.mxu0 0.0
    %1378 = vmatpush1.msra.mxu0 %v1095
    %1379 = vmatprep.subr.mxu0 0.0
    %1380 = vmatpush1.msra.mxu0 %v1096
    %1381 = vmatprep.subr.mxu0 0.0
    %1382 = vmatpush1.msra.mxu0 %v1097
    %1383 = vmatprep.subr.mxu0 0.0
    %1384 = vmatpush1.msra.mxu0 %v1098
    %1385 = vmatprep.subr.mxu0 0.0
    %1386 = vmatpush1.msra.mxu0 %v1099
    %1387 = vmatprep.subr.mxu0 0.0
    %1388 = vmatpush1.msra.mxu0 %v1100
    %1389 = vmatprep.subr.mxu0 0.0
    %1390 = vmatpush1.msra.mxu0 %v1101
    %1391 = vmatprep.subr.mxu0 0.0
    %1392 = vmatpush1.msra.mxu0 %v1102
    %1393 = vmatprep.subr.mxu0 0.0
    %1394 = vmatpush1.msra.mxu0 0.0
    %1395 = vmatprep.subr.mxu0 0.0
    %1396 = vmatpush1.msra.mxu0 0.0
    %1397 = vmatprep.subr.mxu0 0.0
    %1398 = vmatpush1.msra.mxu0 0.0
    %1399 = vmatprep.subr.mxu0 0.0
    %1400 = vmatpush1.msra.mxu0 0.0
    %1401 = vmatprep.subr.mxu0 0.0
    %1402 = vmatpush1.msra.mxu0 0.0
    %1403 = vmatprep.subr.mxu0 0.0
    %1404 = vmatpush1.msra.mxu0 0.0
    %1405 = vmatprep.subr.mxu0 0.0
    %1406 = vmatpush1.msra.mxu0 0.0
    %1407 = vmatprep.subr.mxu0 0.0
    %1408 = vmatpush1.msra.mxu0 0.0
    %1409 = vmatprep.subr.mxu0 0.0
    %1410 = vmatpush1.msra.mxu0 0.0
    %1411 = vmatprep.subr.mxu0 0.0
    %1412 = vmatpush1.msra.mxu0 0.0
    %1413 = vmatprep.subr.mxu0 0.0
    %1414 = vmatpush1.msra.mxu0 0.0
    %1415 = vmatprep.subr.mxu0 0.0
    %1416 = vmatpush1.msra.mxu0 0.0
    %1417 = vmatprep.subr.mxu0 0.0
    %1418 = vmatpush1.msra.mxu0 0.0
    %1419 = vmatprep.subr.mxu0 0.0
    %1420 = vmatpush1.msra.mxu0 0.0
    %1421 = vmatprep.subr.mxu0 0.0
    %1422 = vmatpush1.msra.mxu0 0.0
    %1423 = vmatprep.subr.mxu0 0.0
    %1424 = vmatpush1.msra.mxu0 0.0
    %1425 = vmatprep.subr.mxu0 0.0
    %1426 = vmatpush1.msra.mxu0 0.0
    %1427 = vmatprep.subr.mxu0 0.0
    %1428 = vmatpush1.msra.mxu0 0.0
    %1429 = vmatprep.subr.mxu0 0.0
    %1430 = vmatpush1.msra.mxu0 0.0
    %1431 = vmatprep.subr.mxu0 0.0
    %1432 = vmatpush1.msra.mxu0 0.0
    %1433 = vmatprep.mubr.f32.mxu0 0.0
    %1434 = vmatmul.mubr.f32.gmra.mrb[0].mxu0 %v1349
    %v1435 = vpop.f32.mrb[0].mxu0
    %v1436 = vadd.f32 %v1315, %v1435
    %v1437 = vpop.f32.mrb[0].mxu0
    %1438 = vmatprep.mubr.f32.mxu0 0.0
    %1439 = vmatmul.mubr.f32.gmra.mrb[0].mxu0 %v1352
    %v1440 = vpop.f32.mrb[0].mxu0
    %v1441 = vadd.f32 %v1320, %v1440
    %v1442 = vpop.f32.mrb[0].mxu0
    %1443 = vmatprep.mubr.f32.mxu0 0.0
    %1444 = vmatmul.mubr.f32.gmra.mrb[0].mxu0 %v1355
    %v1445 = vpop.f32.mrb[0].mxu0
    %v1446 = vadd.f32 %v1325, %v1445
    %v1447 = vpop.f32.mrb[0].mxu0
    %1448 = vmatprep.mubr.f32.mxu0 0.0
    %1449 = vmatmul.mubr.f32.gmra.mrb[0].mxu0 %v1358
    %v1450 = vpop.f32.mrb[0].mxu0
    %v1451 = vadd.f32 %v1330, %v1450
    %v1452 = vpop.f32.mrb[0].mxu0
    %1453 = vmatprep.mubr.f32.mxu0 0.0
    %1454 = vmatmul.mubr.f32.gmra.mrb[0].mxu0 %v1361
    %v1455 = vpop.f32.mrb[0].mxu0
    %v1456 = vadd.f32 %v1335, %v1455
    %v1457 = vpop.f32.mrb[0].mxu0
    %1458 = vmatprep.mubr.f32.mxu0 0.0
    %1459 = vmatmul.mubr.f32.gmra.mrb[0].mxu0 %v1364
    %v1460 = vpop.f32.mrb[0].mxu0
    %v1461 = vadd.f32 %v1340, %v1460
    %v1462 = vpop.f32.mrb[0].mxu0
    %1463 = vmatprep.mubr.f32.mxu0 0.0
    %1464 = vmatmul.mubr.f32.gmra.mrb[0].mxu0 %v1367
    %v1465 = vpop.f32.mrb[0].mxu0
    %v1466 = vadd.f32 %v1345, %v1465
    %v1467 = vpop.f32.mrb[0].mxu0
    %1468 = vdwg.mxu0
    %v1469 = vld [vmem:[%s13] sm:$0x1]
    %v1471 = vlaneseq
    %v1472 = vshrl.u32 %v1471, 7
    %v1473 = vsub.s32 0, %v1472
    %v1474 = vrot.slane %v1469, %v1473
    %v1476 = vadd.f32 %v1436, %v1474
    %v1477 = vadd.f32 %v1441, %v1474
    %v1478 = vadd.f32 %v1446, %v1474
    %v1479 = vadd.f32 %v1451, %v1474
    %v1480 = vadd.f32 %v1456, %v1474
    %v1481 = vadd.f32 %v1461, %v1474
    %v1482 = vadd.f32 %v1466, %v1474
    %v1483 = vmul.f32 %v1476, %v408
    %v1484 = vmul.f32 %v1477, %v413
    %v1485 = vmul.f32 %v1478, %v418
    %v1486 = vmul.f32 %v1479, %v423
    %v1487 = vmul.f32 %v1480, %v428
    %v1488 = vmul.f32 %v1481, %v433
    %v1489 = vmul.f32 %v1482, %v438
    %v1490 = vlaneseq
    %v1491 = vand.u32 %v1490, 127
    %vm1492 = vcmp.eq.s32.totalorder %v1491, 8
    %v1493 = vld [vmem:[%s4] sm:$0xff]
    %v1494 = vld [vmem:[%s4 + $0x8] sm:$0xff]
    %v1495 = vld [vmem:[%s4 + $0x10] sm:$0xff]
    %v1496 = vld [vmem:[%s4 + $0x18] sm:$0xff]
    %v1497 = vld [vmem:[%s4 + $0x20] sm:$0xff]
    %v1498 = vld [vmem:[%s4 + $0x28] sm:$0xff]
    %v1499 = vld [vmem:[%s4 + $0x30] sm:$0xff]
    %1501 = vset.pattern.permute.xlu0 0
    %1502 = vperm.xlu0 %1501, %v1493
    %v1503 = vpop.permute.xlu0 %1502
    %1506 = vset.pattern.permute.xlu0 0
    %1507 = vperm.xlu0 %1506, %v1494
    %v1508 = vpop.permute.xlu0 %1507
    %1511 = vset.pattern.permute.xlu0 0
    %1512 = vperm.xlu0 %1511, %v1495
    %v1513 = vpop.permute.xlu0 %1512
    %1516 = vset.pattern.permute.xlu0 0
    %1517 = vperm.xlu0 %1516, %v1496
    %v1518 = vpop.permute.xlu0 %1517
    %1521 = vset.pattern.permute.xlu0 0
    %1522 = vperm.xlu0 %1521, %v1497
    %v1523 = vpop.permute.xlu0 %1522
    %1526 = vset.pattern.permute.xlu0 0
    %1527 = vperm.xlu0 %1526, %v1498
    %v1528 = vpop.permute.xlu0 %1527
    %1531 = vset.pattern.permute.xlu0 0
    %1532 = vperm.xlu0 %1531, %v1499
    %v1533 = vpop.permute.xlu0 %1532
    %v1535 = vmul.f32 %v1483, %v1503
    %v1536 = vmul.f32 %v1484, %v1508
    %v1537 = vmul.f32 %v1485, %v1513
    %v1538 = vmul.f32 %v1486, %v1518
    %v1539 = vmul.f32 %v1487, %v1523
    %v1540 = vmul.f32 %v1488, %v1528
    %v1541 = vmul.f32 %v1489, %v1533
    %v1542 = vmax.f32 %v1535, 0.0
    %v1543 = vmax.f32 %v1536, 0.0
    %v1544 = vmax.f32 %v1537, 0.0
    %v1545 = vmax.f32 %v1538, 0.0
    %v1546 = vmax.f32 %v1539, 0.0
    %v1547 = vmax.f32 %v1540, 0.0
    %v1548 = vmax.f32 %v1541, 0.0
    %v1549 = vsel %vm1492, %v1542, %v1483
    %v1550 = vsel %vm1492, %v1543, %v1484
    %v1551 = vsel %vm1492, %v1544, %v1485
    %v1552 = vsel %vm1492, %v1545, %v1486
    %v1553 = vsel %vm1492, %v1546, %v1487
    %v1554 = vsel %vm1492, %v1547, %v1488
    %v1555 = vsel %vm1492, %v1548, %v1489
    %1556 = vst [vmem:[#allocation2] sm:$0xff] %v1549
    %1557 = vst [vmem:[#allocation2 + $0x8] sm:$0xff] %v1550
    %1558 = vst [vmem:[#allocation2 + $0x10] sm:$0xff] %v1551
    %1559 = vst [vmem:[#allocation2 + $0x18] sm:$0xff] %v1552
    %1560 = vst [vmem:[#allocation2 + $0x20] sm:$0xff] %v1553
    %1561 = vst [vmem:[#allocation2 + $0x28] sm:$0xff] %v1554
    %1562 = vst [vmem:[#allocation2 + $0x30] sm:$0xff] %v1555
    // Predicated region
    $region58: #{tpu_custom_call.1} parent=1 // pred_check
      _
    $region59: #{tpu_custom_call.1} parent=1 // pred_check_branch
      %1564 = sbr.rel (0) target = $region61
    $region60: #{tpu_custom_call.1} parent=1 // pred_region
      %s1566 = ssub.s32 896, 896
      %1567 = vsyncadd [#allocation3], %s1566
      %s1568 = sshll.u32 [#allocation2], 4
      %s1569 = int_to_ptr.vmem [resolvable:$true] %s1568
      %1574 = dma.vmem_to_hbm [thread:$0]  %s1569, 896, %s14, [#allocation3], 128, 128, 8
    $region61: #{tpu_custom_call.1} parent=1 // pred_fallthru
      _
    // Predicated region
    $region62: #{tpu_custom_call.1} parent=1 // pred_check
      _
    $region63: #{tpu_custom_call.1} parent=1 // pred_check_branch
      %1576 = sbr.rel (0) target = $region65
    $region64: #{tpu_custom_call.1} parent=1 // pred_region
      %1577 = dma.done [#allocation3], 896
    $region65: #{tpu_custom_call.1} parent=1 // pred_fallthru
      _
    %1578 = vsyncpa [#allocation3], 1

</llo_original>
